<compile_context>
chip_gen: v6e
topology: v6e:2x2x1
jax: 0.10.0
libtpu: 0.0.40
codegen_flags: <defaults>
</compile_context>

<pallas_src>
from functools import partial

import numpy as np
import jax
import jax.numpy as jnp
from jax import lax
from jax.experimental import pallas as pl
from jax.experimental.pallas import tpu as pltpu

# Keep f32 matmul precision everywhere (XLA reference AND Pallas kernels) so the
# validation can use tight (1e-5) tolerances.
jax.config.update("jax_default_matmul_precision", "highest")
_HIGHEST = jax.lax.Precision.HIGHEST

# Budget for the live (12B, chunk) blended-transform slab (~half the vreg file).
_P_VREG_BUDGET_BYTES = 128 * 1024


# ---------------------------------------------------------------------------
# Tiling helpers
# ---------------------------------------------------------------------------

def _pick_vertex_tile(n_v, cap=2048):
    """Largest power-of-two lane tile (>=128, <= cap) and the padded vertex count."""
    n128 = ((n_v + 127) // 128) * 128
    bound = min(n128, cap)
    tv = 128
    while tv * 2 <= bound:
        tv *= 2
    n_pad = ((n_v + tv - 1) // tv) * tv
    return tv, n_pad


# ---------------------------------------------------------------------------
# Fused Pallas kernel: shape blend + linear blend skinning
# ---------------------------------------------------------------------------

def _smpl_fused_kernel(ba_ref, sd_ref, a12_ref, w_ref, vsh_ref, out_ref):
    # ba_ref : (3B, 3*(nb+1))  component-major [beta | 1] blocks (resident)
    # sd_ref : (3*(nb+1), TV)  planar shapedirs (+ v_template row), lane tile
    # a12_ref: (12B, n_J)      element-major top-3x4 rest-relative transforms (resident)
    # w_ref  : (n_J, TV)       transposed, zero-padded blend weights, lane tile
    # vsh_ref: (3B, TV)        component-major shaped vertices (output)
    # out_ref: (3B, TV)        component-major skinned vertices (output)
    B = vsh_ref.shape[0] // 3
    tv = vsh_ref.shape[1]

    # Lane chunk: bound the live (12B, ch) blended-transform slab so the
    # epilogue does not spill (v5e has a single store slot), while keeping the
    # DMA tile (TV) large.  All quantities are compile-time constants.
    ch = tv
    while ch > 128 and 12 * B * ch * 4 > _P_VREG_BUDGET_BYTES:
        ch //= 2
    n_chunks = tv // ch

    ba = ba_ref[...]            # tiny, resident in vregs across chunks
    a12 = a12_ref[...]

    def body(i, carry):
        sl = pl.ds(pl.multiple_of(i * ch, 128), ch)
        # Shape blend (+ v_template add) for this lane chunk.
        vsh = jnp.dot(ba, sd_ref[:, sl], precision=_HIGHEST,
                      preferred_element_type=jnp.float32)                # (3B, ch)
        vsh_ref[:, sl] = vsh
        # Blend the 12 useful transform elements of ALL batches in one matmul.
        P = jnp.dot(a12, w_ref[:, sl], precision=_HIGHEST,
                    preferred_element_type=jnp.float32)                  # (12B, ch)
        vx = vsh[0 * B:1 * B]
        vy = vsh[1 * B:2 * B]
        vz = vsh[2 * B:3 * B]
        for r in range(3):  # static: the 3 output coordinates
            # Element e = 3*col + r is R[r, col]; e = 9 + r is t[r].
            out_ref[pl.ds(r * B, B), sl] = (
                P[(0 + r) * B:(1 + r) * B] * vx
                + P[(3 + r) * B:(4 + r) * B] * vy
                + P[(6 + r) * B:(7 + r) * B] * vz
                + P[(9 + r) * B:(10 + r) * B])
        return carry

    lax.fori_loop(0, n_chunks, body, 0, unroll=True)


def smpl_shape_lbs(beta_aug, sd_aug, a12_all, blendw_t, *, tv):
    """Fused shape blend + LBS, vertex-tiled on the lane axis (single pallas_call)."""
    M3, K = beta_aug.shape
    M12, n_j = a12_all.shape
    n_vp = sd_aug.shape[1]
    return pl.pallas_call(
        _smpl_fused_kernel,
        out_shape=(jax.ShapeDtypeStruct((M3, n_vp), jnp.float32),
                   jax.ShapeDtypeStruct((M3, n_vp), jnp.float32)),
        grid=(n_vp // tv,),
        in_specs=[
            pl.BlockSpec((M3, K), lambda t: (0, 0)),      # resident
            pl.BlockSpec((K, tv), lambda t: (0, t)),
            pl.BlockSpec((M12, n_j), lambda t: (0, 0)),   # resident
            pl.BlockSpec((n_j, tv), lambda t: (0, t)),
        ],
        out_specs=(
            pl.BlockSpec((M3, tv), lambda t: (0, t)),
            pl.BlockSpec((M3, tv), lambda t: (0, t)),
        ),
        compiler_params=pltpu.CompilerParams(
            dimension_semantics=("parallel",)),           # no reduction axis left
    )(beta_aug, sd_aug, a12_all, blendw_t)


# ---------------------------------------------------------------------------
# Small per-joint math (plain JAX glue; n_J is tiny and sequential)
# ---------------------------------------------------------------------------

def rodrigues(rvec):
    """Axis-angle (..., 3) -> rotation matrices (..., 3, 3)."""
    eps = 1e-8
    sq = jnp.sum(rvec * rvec, axis=-1, keepdims=True)
    angle = jnp.sqrt(sq + eps)
    axis = rvec / angle
    ca = jnp.cos(angle)[..., None]
    sa = jnp.sin(angle)[..., None]
    x, y, z = axis[..., 0], axis[..., 1], axis[..., 2]
    zero = jnp.zeros_like(x)
    K = jnp.stack([zero, -z, y, z, zero, -x, -y, x, zero], axis=-1)
    K = K.reshape(rvec.shape[:-1] + (3, 3))
    outer = axis[..., :, None] * axis[..., None, :]
    eye = jnp.eye(3, dtype=rvec.dtype)
    return ca * eye + sa * K + (1.0 - ca) * outer


def relative_transforms(R, Jrest, parents):
    """Forward kinematics + rest-pose removal -> (B, n_J, 4, 4) transforms."""
    B, nJ = R.shape[0], R.shape[1]
    dt = R.dtype

    def make44(Rj, tj):
        top = jnp.concatenate([Rj, tj[..., None]], axis=-1)            # (B,3,4)
        bot = jnp.broadcast_to(jnp.array([[[0., 0., 0., 1.]]], dt), (B, 1, 4))
        return jnp.concatenate([top, bot], axis=-2)                    # (B,4,4)

    G = [make44(R[:, 0], Jrest[:, 0])]
    for j in range(1, nJ):
        p = int(parents[j])
        G.append(G[p] @ make44(R[:, j], Jrest[:, j] - Jrest[:, p]))
    G = jnp.stack(G, axis=1)                                           # (B,nJ,4,4)

    Grot = G[..., :3, :3]
    Gt = G[..., :3, 3]
    t_rel = Gt - jnp.einsum('bjrc,bjc->bjr', Grot, Jrest, precision=_HIGHEST)
    top = jnp.concatenate([Grot, t_rel[..., None]], axis=-1)           # (B,nJ,3,4)
    bot = jnp.broadcast_to(jnp.array([[[[0., 0., 0., 1.]]]], dt), (B, nJ, 1, 4))
    return jnp.concatenate([top, bot], axis=-2)                        # (B,nJ,4,4)


# ---------------------------------------------------------------------------
# Jitted forward implementation
# ---------------------------------------------------------------------------

def _smpl_forward(bufs, theta, beta, h2w, *, parents, n_V, n_J, n_betas,
                  tv, n_Vp, inverse):
    B = theta.shape[0]
    if beta is None:
        # Matches the PyTorch expand() path exactly: zero betas make the
        # augmented matmul reproduce v_template / template joints bit-for-bit.
        beta = jnp.zeros((B, n_betas), jnp.float32)

    # Component-major [beta | 1] augmentation: row c*B + b carries [beta_b | 1]
    # in the column block of coordinate c.
    X = jnp.concatenate([beta.astype(jnp.float32),
                         jnp.ones((B, 1), jnp.float32)], axis=1)        # (B, nb+1)
    eye3 = jnp.eye(3, dtype=jnp.float32)
    beta_aug = (eye3[:, None, :, None] * X[None, :, None, :]
                ).reshape(3 * B, 3 * (n_betas + 1))                     # (3B, 3(nb+1))

    # Joint regression on the tiny beta basis (J_regressor never touches Pallas).
    jt = jnp.matmul(beta_aug, bufs['JR_small'], precision=_HIGHEST)     # (3B, n_J)
    J = jt.reshape(3, B, n_J).transpose(1, 2, 0)                        # (B, n_J, 3)

    R = rodrigues(jnp.reshape(theta, (B, n_J, 3)))
    A = relative_transforms(R, J, parents)                              # (B,nJ,4,4)

    if inverse:
        # TODO(synk): inverse LBS path (per-vertex 4x4 inverse) stays in plain JAX.
        vsh_flat = jnp.matmul(beta_aug, bufs['sd_aug'][:, :n_V], precision=_HIGHEST)
        v_shaped = vsh_flat.reshape(3, B, n_V).transpose(1, 2, 0)
        T = jnp.einsum('vj,bjrc->bvrc', bufs['blendW'], A, precision=_HIGHEST)
        Ti = jnp.linalg.inv(T)
        v = (jnp.einsum('bvrc,bvc->bvr', Ti[..., :3, :3], v_shaped,
                        precision=_HIGHEST) + Ti[..., :3, 3])
        if h2w is not None:
            v = (jnp.einsum('brc,bvc->bvr', h2w[..., :3, :3], v,
                            precision=_HIGHEST) + h2w[..., :3, 3][:, None, :])
        return v, v_shaped

    Atop = A[:, :, :3, :]                                               # (B,nJ,3,4)
    if h2w is not None:
        # Fold the rigid world transform into the per-joint transforms:
        # sum_j w_j (H A_j) == H sum_j w_j A_j.  Exact because SMPL blend
        # weights sum to 1 per vertex (otherwise the folded translation would
        # be scaled by sum_j w_j).
        Hr = h2w[..., :3, :3]
        Ht = h2w[..., :3, 3]
        Atop = jnp.einsum('brk,bjkc->bjrc', Hr, Atop, precision=_HIGHEST)
        Atop = Atop.at[..., 3].add(Ht[:, None, :])

    # Element-major flatten of the useful 3x4 (rows 12..15 never computed):
    # row index e*B + b with e = 3*col + row for R columns, e = 9..11 for t.
    a12_all = Atop.transpose(3, 2, 0, 1).reshape(12 * B, n_J)           # (12B, n_J)

    vsh_flat, v_flat = smpl_shape_lbs(beta_aug, bufs['sd_aug'], a12_all,
                                      bufs['blendW_t'], tv=tv)          # Pallas
    # (3B, n_Vp) component-major is the lane-dense layout; convert to the
    # (B, n_V, 3) PyTorch convention only here, at the API boundary.
    v_shaped = vsh_flat.reshape(3, B, n_Vp)[:, :, :n_V].transpose(1, 2, 0)
    v = v_flat.reshape(3, B, n_Vp)[:, :, :n_V].transpose(1, 2, 0)
    return v, v_shaped


# ---------------------------------------------------------------------------
# SMPL module equivalent
# ---------------------------------------------------------------------------

class SMPLPallas:
    """Pallas/JAX equivalent of neuralbody SMPL (takes arrays instead of a .npy)."""

    def __init__(self, mu, shapedirs, J_regressor, kin_parents, blendW,
                 *, vertex_tile_cap=2048):
        mu = jnp.asarray(mu, jnp.float32)                    # (n_V, 3)
        shapedirs = jnp.asarray(shapedirs, jnp.float32)      # (n_betas, 3*n_V), v-major
        J_regressor = jnp.asarray(J_regressor, jnp.float32)  # (n_V, n_J)
        blendW = jnp.asarray(blendW, jnp.float32)            # (n_V, n_J)

        self.n_V = mu.shape[0]
        self.n_J = J_regressor.shape[1]
        self.n_betas = shapedirs.shape[0]
        self.kin_parents = np.asarray(kin_parents, np.int32)

        self.v = mu                                          # "Parameter" v_template
        self.J = J_regressor.T @ mu                          # (n_J, 3) template joints
        self.blendW = blendW

        # ---- one-time host-side planar re-layout + zero padding ---------------
        tv, n_vp = _pick_vertex_tile(self.n_V, vertex_tile_cap)
        self.tv, self.n_Vp = tv, n_vp
        pad = n_vp - self.n_V

        mu_plan = jnp.pad(mu.T, ((0, 0), (0, pad)))          # (3, n_Vp)
        sd_plan = jnp.pad(
            shapedirs.reshape(self.n_betas, self.n_V, 3).transpose(0, 2, 1),
            ((0, 0), (0, 0), (0, pad)))                      # (nb, 3, n_Vp)
        # SD_aug rows per coordinate c: [shapedirs_c (nb rows); v_template_c (1 row)]
        self.sd_aug = jnp.concatenate(
            [jnp.concatenate([sd_plan[:, c, :], mu_plan[c:c + 1, :]], axis=0)
             for c in range(3)], axis=0)                     # (3*(nb+1), n_Vp)
        self.blendW_t = jnp.pad(blendW.T, ((0, 0), (0, pad)))        # (n_J, n_Vp)
        # Joint regression collapsed onto the beta basis: kills the in-kernel
        # J_regressor stream and the grid reduction entirely.
        self.JR_small = jnp.matmul(self.sd_aug[:, :self.n_V], J_regressor,
                                   precision=_HIGHEST)       # (3*(nb+1), n_J)
        # TODO(synk): face buffers (f, vbyf via geometry.vertex_by_face) are unused
        # by forward() and are omitted.

        cfg = dict(parents=self.kin_parents, n_V=self.n_V, n_J=self.n_J,
                   n_betas=self.n_betas, tv=self.tv, n_Vp=self.n_Vp)
        self._fwd = {inv: jax.jit(partial(_smpl_forward, **cfg, inverse=inv))
                     for inv in (False, True)}

    def forward(self, theta, beta=None, h2w=None, inverse=False):
        bufs = dict(sd_aug=self.sd_aug, blendW_t=self.blendW_t,
                    JR_small=self.JR_small, blendW=self.blendW)
        return self._fwd[bool(inverse)](bufs, theta, beta, h2w)


# ---------------------------------------------------------------------------
# Pure-JAX reference (mirrors the PyTorch forward semantics) for validation
# ---------------------------------------------------------------------------

def reference_forward(mu, shapedirs, J_regressor, blendW, parents, theta, beta, h2w):
    B = theta.shape[0]
    n_V = mu.shape[0]
    n_J = J_regressor.shape[1]
    v_shaped = (jnp.matmul(beta, shapedirs, precision=_HIGHEST)
                .reshape(B, n_V, 3) + mu)
    Jx = jnp.matmul(v_shaped[..., 0], J_regressor, precision=_HIGHEST)
    Jy = jnp.matmul(v_shaped[..., 1], J_regressor, precision=_HIGHEST)
    Jz = jnp.matmul(v_shaped[..., 2], J_regressor, precision=_HIGHEST)
    J = jnp.stack([Jx, Jy, Jz], axis=-1)
    R = rodrigues(theta.reshape(B, n_J, 3))
    A = relative_transforms(R, J, parents)
    T = jnp.einsum('vj,bjrc->bvrc', blendW, A, precision=_HIGHEST)
    v = (jnp.einsum('bvrc,bvc->bvr', T[..., :3, :3], v_shaped, precision=_HIGHEST)
         + T[..., :3, 3])
    if h2w is not None:
        v = (jnp.einsum('brc,bvc->bvr', h2w[..., :3, :3], v, precision=_HIGHEST)
             + h2w[..., :3, 3][:, None, :])
    return v, v_shaped


# ---------------------------------------------------------------------------
# Demo
# ---------------------------------------------------------------------------

if __name__ == "__main__":
    key = jax.random.PRNGKey(0)
    # Small shapes; n_V deliberately NOT a multiple of 128 to exercise padding.
    B, n_V, n_J, n_betas = 2, 200, 8, 10
    ks = jax.random.split(key, 8)

    # Deterministic synthetic "SMPL" parameters (shapes follow the module).
    mu = 0.5 * jax.random.normal(ks[0], (n_V, 3), jnp.float32)            # v_template
    shapedirs = 0.05 * jax.random.normal(ks[1], (n_betas, 3 * n_V), jnp.float32)
    Jreg_raw = jax.random.uniform(ks[2], (n_V, n_J), jnp.float32)
    J_regressor = Jreg_raw / jnp.sum(Jreg_raw, axis=0, keepdims=True)     # (n_V, n_J)
    W_raw = jax.random.uniform(ks[3], (n_V, n_J), jnp.float32)
    blendW = W_raw / jnp.sum(W_raw, axis=1, keepdims=True)                # (n_V, n_J)
    kin_parents = np.array([0, 0, 1, 2, 3, 1, 5, 6], dtype=np.int32)

    # Inputs to forward().
    theta = 0.3 * jax.random.normal(ks[4], (B, n_J, 3), jnp.float32)      # axis-angle
    beta = jax.random.normal(ks[5], (B, n_betas), jnp.float32)            # shape coeffs
    ang = jax.random.normal(ks[6], (B, 3), jnp.float32)
    Rw = rodrigues(ang[:, None, :])[:, 0]                                 # (B,3,3)
    tw = jax.random.normal(ks[7], (B, 3, 1), jnp.float32)
    h2w = jnp.concatenate(
        [jnp.concatenate([Rw, tw], axis=-1),
         jnp.broadcast_to(jnp.array([[[0., 0., 0., 1.]]], jnp.float32), (B, 1, 4))],
        axis=-2)                                                          # (B,4,4)

    model = SMPLPallas(mu, shapedirs, J_regressor, kin_parents, blendW)
    v, v_shaped = model.forward(theta, beta=beta, h2w=h2w, inverse=False)
    v = jax.block_until_ready(v)
    v_shaped = jax.block_until_ready(v_shaped)

    v_ref, vs_ref = reference_forward(mu, shapedirs, J_regressor, blendW,
                                      kin_parents, theta, beta, h2w)
    np.testing.assert_allclose(np.asarray(v_shaped), np.asarray(vs_ref),
                               rtol=1e-5, atol=1e-5)
    np.testing.assert_allclose(np.asarray(v), np.asarray(v_ref),
                               rtol=1e-5, atol=1e-5)
    print("KERNEL_OK")
</pallas_src>

<mosaic_0001>
module attributes {stable_mosaic.version = 11 : i64} {
  func.func @_smpl_fused_kernel(%arg0: i32, %arg1: memref<6x33xf32, #tpu.memory_space<vmem>>, %arg2: memref<33x256xf32, #tpu.memory_space<vmem>>, %arg3: memref<24x8xf32, #tpu.memory_space<vmem>>, %arg4: memref<8x256xf32, #tpu.memory_space<vmem>>, %arg5: memref<6x256xf32, #tpu.memory_space<vmem>>, %arg6: memref<6x256xf32, #tpu.memory_space<vmem>>) attributes {dimension_semantics = [#tpu.dimension_semantics<parallel>], iteration_bounds = array<i64: 1>, scalar_prefetch = 0 : i64, scratch_operands = 0 : i64, tpu.core_type = #tpu.core_type<tc>, window_params = [{pipeline_mode = #tpu.pipeline_mode<synchronous>, transform_indices = @transform_0, window_bounds = array<i64: 6, 33>}, {transform_indices = @transform_1, window_bounds = array<i64: 33, 256>}, {pipeline_mode = #tpu.pipeline_mode<synchronous>, transform_indices = @transform_2, window_bounds = array<i64: 24, 8>}, {transform_indices = @transform_3, window_bounds = array<i64: 8, 256>}, {transform_indices = @transform_4, window_bounds = array<i64: 6, 256>}, {transform_indices = @transform_5, window_bounds = array<i64: 6, 256>}]} {
    %c0 = arith.constant 0 : index
    %c0_0 = arith.constant 0 : index
    %0 = vector.load %arg1[%c0, %c0_0] : memref<6x33xf32, #tpu.memory_space<vmem>>, vector<6x33xf32>
    %c0_1 = arith.constant 0 : index
    %c0_2 = arith.constant 0 : index
    %1 = vector.load %arg3[%c0_1, %c0_2] : memref<24x8xf32, #tpu.memory_space<vmem>>, vector<24x8xf32>
    %c0_i32 = arith.constant 0 : i32
    %c256_i32 = arith.constant 256 : i32
    %2 = arith.muli %c0_i32, %c256_i32 : i32
    %3 = tpu.assume_multiple %2, 128 : i32
    %c0_3 = arith.constant 0 : index
    %4 = arith.index_cast %3 : i32 to index
    %5 = vector.load %arg2[%c0_3, %4] : memref<33x256xf32, #tpu.memory_space<vmem>>, vector<33x256xf32>
    %cst = arith.constant dense<0.000000e+00> : vector<6x256xf32>
    %6 = tpu.matmul %0, %5, %cst {dimension_numbers = #tpu.dot_dimension_numbers<[1], [0], [0], [1], [0, 0, 1, 1], [], []>, precision = #tpu.contract_precision<fp32>} : vector<6x33xf32>, vector<33x256xf32>, vector<6x256xf32> -> vector<6x256xf32>
    %c0_4 = arith.constant 0 : index
    %7 = arith.index_cast %3 : i32 to index
    %8 = vector.load %arg5[%c0_4, %7] : memref<6x256xf32, #tpu.memory_space<vmem>>, vector<6x256xf32>
    tpu.vector_store %arg5[%c0_4, %7], %6 {strides = array<i32>} : memref<6x256xf32, #tpu.memory_space<vmem>>, vector<6x256xf32>,
    %c0_5 = arith.constant 0 : index
    %9 = arith.index_cast %3 : i32 to index
    %10 = vector.load %arg4[%c0_5, %9] : memref<8x256xf32, #tpu.memory_space<vmem>>, vector<8x256xf32>
    %cst_6 = arith.constant dense<0.000000e+00> : vector<24x256xf32>
    %11 = tpu.matmul %1, %10, %cst_6 {dimension_numbers = #tpu.dot_dimension_numbers<[1], [0], [0], [1], [0, 0, 1, 1], [], []>, precision = #tpu.contract_precision<fp32>} : vector<24x8xf32>, vector<8x256xf32>, vector<24x256xf32> -> vector<24x256xf32>
    %12 = vector.extract_strided_slice %6 {offsets = [0, 0], sizes = [2, 256], strides = [1, 1]} : vector<6x256xf32> to vector<2x256xf32>
    %13 = vector.extract_strided_slice %6 {offsets = [2, 0], sizes = [2, 256], strides = [1, 1]} : vector<6x256xf32> to vector<2x256xf32>
    %14 = vector.extract_strided_slice %6 {offsets = [4, 0], sizes = [2, 256], strides = [1, 1]} : vector<6x256xf32> to vector<2x256xf32>
    %15 = vector.extract_strided_slice %11 {offsets = [0, 0], sizes = [2, 256], strides = [1, 1]} : vector<24x256xf32> to vector<2x256xf32>
    %16 = arith.mulf %15, %12 : vector<2x256xf32>
    %17 = vector.extract_strided_slice %11 {offsets = [6, 0], sizes = [2, 256], strides = [1, 1]} : vector<24x256xf32> to vector<2x256xf32>
    %18 = arith.mulf %17, %13 : vector<2x256xf32>
    %19 = arith.addf %16, %18 : vector<2x256xf32>
    %20 = vector.extract_strided_slice %11 {offsets = [12, 0], sizes = [2, 256], strides = [1, 1]} : vector<24x256xf32> to vector<2x256xf32>
    %21 = arith.mulf %20, %14 : vector<2x256xf32>
    %22 = arith.addf %19, %21 : vector<2x256xf32>
    %23 = vector.extract_strided_slice %11 {offsets = [18, 0], sizes = [2, 256], strides = [1, 1]} : vector<24x256xf32> to vector<2x256xf32>
    %24 = arith.addf %22, %23 : vector<2x256xf32>
    %c0_7 = arith.constant 0 : index
    %25 = arith.index_cast %3 : i32 to index
    %26 = vector.load %arg6[%c0_7, %25] : memref<6x256xf32, #tpu.memory_space<vmem>>, vector<2x256xf32>
    tpu.vector_store %arg6[%c0_7, %25], %24 {strides = array<i32>} : memref<6x256xf32, #tpu.memory_space<vmem>>, vector<2x256xf32>,
    %27 = vector.extract_strided_slice %11 {offsets = [2, 0], sizes = [2, 256], strides = [1, 1]} : vector<24x256xf32> to vector<2x256xf32>
    %28 = arith.mulf %27, %12 : vector<2x256xf32>
    %29 = vector.extract_strided_slice %11 {offsets = [8, 0], sizes = [2, 256], strides = [1, 1]} : vector<24x256xf32> to vector<2x256xf32>
    %30 = arith.mulf %29, %13 : vector<2x256xf32>
    %31 = arith.addf %28, %30 : vector<2x256xf32>
    %32 = vector.extract_strided_slice %11 {offsets = [14, 0], sizes = [2, 256], strides = [1, 1]} : vector<24x256xf32> to vector<2x256xf32>
    %33 = arith.mulf %32, %14 : vector<2x256xf32>
    %34 = arith.addf %31, %33 : vector<2x256xf32>
    %35 = vector.extract_strided_slice %11 {offsets = [20, 0], sizes = [2, 256], strides = [1, 1]} : vector<24x256xf32> to vector<2x256xf32>
    %36 = arith.addf %34, %35 : vector<2x256xf32>
    %c2 = arith.constant 2 : index
    %37 = arith.index_cast %3 : i32 to index
    %38 = vector.load %arg6[%c2, %37] : memref<6x256xf32, #tpu.memory_space<vmem>>, vector<2x256xf32>
    tpu.vector_store %arg6[%c2, %37], %36 {strides = array<i32>} : memref<6x256xf32, #tpu.memory_space<vmem>>, vector<2x256xf32>,
    %39 = vector.extract_strided_slice %11 {offsets = [4, 0], sizes = [2, 256], strides = [1, 1]} : vector<24x256xf32> to vector<2x256xf32>
    %40 = arith.mulf %39, %12 : vector<2x256xf32>
    %41 = vector.extract_strided_slice %11 {offsets = [10, 0], sizes = [2, 256], strides = [1, 1]} : vector<24x256xf32> to vector<2x256xf32>
    %42 = arith.mulf %41, %13 : vector<2x256xf32>
    %43 = arith.addf %40, %42 : vector<2x256xf32>
    %44 = vector.extract_strided_slice %11 {offsets = [16, 0], sizes = [2, 256], strides = [1, 1]} : vector<24x256xf32> to vector<2x256xf32>
    %45 = arith.mulf %44, %14 : vector<2x256xf32>
    %46 = arith.addf %43, %45 : vector<2x256xf32>
    %47 = vector.extract_strided_slice %11 {offsets = [22, 0], sizes = [2, 256], strides = [1, 1]} : vector<24x256xf32> to vector<2x256xf32>
    %48 = arith.addf %46, %47 : vector<2x256xf32>
    %c4 = arith.constant 4 : index
    %49 = arith.index_cast %3 : i32 to index
    %50 = vector.load %arg6[%c4, %49] : memref<6x256xf32, #tpu.memory_space<vmem>>, vector<2x256xf32>
    tpu.vector_store %arg6[%c4, %49], %48 {strides = array<i32>} : memref<6x256xf32, #tpu.memory_space<vmem>>, vector<2x256xf32>,
    %c1_i32 = arith.constant 1 : i32
    return
  }
  func.func @transform_0(%arg0: i32) -> (i32, i32) {
    %c0_i32 = arith.constant 0 : i32
    %c0_i32_0 = arith.constant 0 : i32
    %c0_i32_1 = arith.constant 0 : i32
    return %c0_i32, %c0_i32_0 : i32, i32
  }
  func.func @transform_1(%arg0: i32) -> (i32, i32) {
    %c0_i32 = arith.constant 0 : i32
    %c0_i32_0 = arith.constant 0 : i32
    return %c0_i32, %arg0 : i32, i32
  }
  func.func @transform_2(%arg0: i32) -> (i32, i32) {
    %c0_i32 = arith.constant 0 : i32
    %c0_i32_0 = arith.constant 0 : i32
    %c0_i32_1 = arith.constant 0 : i32
    return %c0_i32, %c0_i32_0 : i32, i32
  }
  func.func @transform_3(%arg0: i32) -> (i32, i32) {
    %c0_i32 = arith.constant 0 : i32
    %c0_i32_0 = arith.constant 0 : i32
    return %c0_i32, %arg0 : i32, i32
  }
  func.func @transform_4(%arg0: i32) -> (i32, i32) {
    %c0_i32 = arith.constant 0 : i32
    %c0_i32_0 = arith.constant 0 : i32
    return %c0_i32, %arg0 : i32, i32
  }
  func.func @transform_5(%arg0: i32) -> (i32, i32) {
    %c0_i32 = arith.constant 0 : i32
    %c0_i32_0 = arith.constant 0 : i32
    return %c0_i32, %arg0 : i32, i32
  }
}

</mosaic_0001>

<llo_original>
// kernel: _smpl_forward.1
$region0: #{_smpl_forward.1}
  #allocation0 [shape = 'u32[]', space=smem, size = 0x4, offset = 0x4, fixed_abs, tag = 'smem constant byte address 0x4 - core index']
  #allocation1 [shape = 'u32[144,128]{1,0:T(1,128)}', space=vmem, size = 0x12000, scoped, tag = 'internal scratch']
  %s0 = inlined_call_operand.vmem [shape: f32[6,33], index: 0, kind: input, shape index: {}]
  %s1 = inlined_call_operand.vmem [shape: f32[33,256], index: 1, kind: input, shape index: {}]
  %s2 = inlined_call_operand.vmem [shape: f32[24,8], index: 2, kind: input, shape index: {}]
  %s3 = inlined_call_operand.vmem [shape: f32[8,256], index: 3, kind: input, shape index: {}]
  %s4 = inlined_call_operand.vmem [shape: f32[6,256], index: 4, kind: output, shape index: {0}]
  %s5 = inlined_call_operand.vmem [shape: f32[6,256], index: 5, kind: output, shape index: {1}]
  %6 = xla_tuple %s4, %s5
  %s7 = sld [smem:[#allocation0]]
  $region34: #{_smpl_forward.1} parent=0
    _
  %s9 = ssub.s32 1, %s7
  %s10 = scalar_select 0, %s9, %s7
  // Predicated region
  $region2: #{_smpl_forward.1} parent=0 // pred_check
    _
  $region3: #{_smpl_forward.1} parent=0 // pred_check_branch
    %12 = sbr.rel (0) target = $region5
  $region4: #{_smpl_forward.1} parent=0 // pred_region
    _
  $region5: #{_smpl_forward.1} parent=0 // pred_fallthru
    _
  // Predicated region
  $region6: #{_smpl_forward.1} parent=0 // pred_check
    _
  $region7: #{_smpl_forward.1} parent=0 // pred_check_branch
    %14 = sbr.rel (0) target = $region9
  $region8: #{_smpl_forward.1} parent=0 // pred_region
    _
  $region9: #{_smpl_forward.1} parent=0 // pred_fallthru
    _
  // Predicated region
  $region10: #{_smpl_forward.1} parent=0 // pred_check
    _
  $region11: #{_smpl_forward.1} parent=0 // pred_check_branch
    %16 = sbr.rel (0) target = $region13
  $region12: #{_smpl_forward.1} parent=0 // pred_region
    _
  $region13: #{_smpl_forward.1} parent=0 // pred_fallthru
    _
  // Predicated region
  $region14: #{_smpl_forward.1} parent=0 // pred_check
    _
  $region15: #{_smpl_forward.1} parent=0 // pred_check_branch
    %18 = sbr.rel (0) target = $region17
  $region16: #{_smpl_forward.1} parent=0 // pred_region
    _
  $region17: #{_smpl_forward.1} parent=0 // pred_fallthru
    _
  %v19 = vld [vmem:[%s0] sm:$0x3f]
  %v20 = vld [vmem:[%s2] sm:$0xff]
  %v21 = vld [vmem:[%s2 + $0x8] sm:$0xff]
  %v22 = vld [vmem:[%s2 + $0x10] sm:$0xff]
  %v23 = vld [vmem:[%s1] sm:$0xff]
  %v24 = vld [vmem:[%s1 + $0x8] sm:$0xff]
  %v25 = vld [vmem:[%s1 + $0x10] sm:$0xff]
  %v26 = vld [vmem:[%s1 + $0x18] sm:$0xff]
  %v27 = vld [vmem:[%s1 + $0x20] sm:$0xff]
  %v28 = vld [vmem:[%s1 + $0x28] sm:$0xff]
  %v29 = vld [vmem:[%s1 + $0x30] sm:$0xff]
  %v30 = vld [vmem:[%s1 + $0x38] sm:$0xff]
  %v31 = vld [vmem:[%s1 + $0x40] sm:$0x1]
  %v32 = vld [vmem:[%s1 + $0x48] sm:$0x1]
  %vm33 = vcmask 269312
  %v35 = vsel %vm33, %v19, 0
  %vm37 = vcmask 1040384
  %v39 = vsel %vm37, %v31, 0
  %v42 = vsel %vm37, %v32, 0
  %44 = vmatprep.subr.mxu0 0.0
  %45 = vmatpush1.msra.mxu0 0.0
  %46 = vmatprep.subr.mxu0 0.0
  %47 = vmatpush1.msra.mxu0 0.0
  %48 = vmatprep.subr.mxu0 0.0
  %49 = vmatpush1.msra.mxu0 0.0
  %50 = vmatprep.subr.mxu0 0.0
  %51 = vmatpush1.msra.mxu0 0.0
  %52 = vmatprep.subr.mxu0 0.0
  %53 = vmatpush1.msra.mxu0 0.0
  %54 = vmatprep.subr.mxu0 0.0
  %55 = vmatpush1.msra.mxu0 0.0
  %56 = vmatprep.subr.mxu0 0.0
  %57 = vmatpush1.msra.mxu0 0.0
  %58 = vmatprep.subr.mxu0 0.0
  %59 = vmatpush1.msra.mxu0 0.0
  %60 = vmatprep.subr.mxu0 0.0
  %61 = vmatpush1.msra.mxu0 0.0
  %62 = vmatprep.subr.mxu0 0.0
  %63 = vmatpush1.msra.mxu0 0.0
  %64 = vmatprep.subr.mxu0 0.0
  %65 = vmatpush1.msra.mxu0 0.0
  %v66 = vand.u32 %v42, 4294901760
  %67 = vmatprep.subr.mxu0 %v66
  %v68 = vand.u32 %v39, 4294901760
  %69 = vmatpush1.msra.mxu0 %v68
  %v70 = vand.u32 %v30, 4294901760
  %71 = vmatprep.subr.mxu0 %v70
  %v72 = vand.u32 %v29, 4294901760
  %73 = vmatpush1.msra.mxu0 %v72
  %v74 = vand.u32 %v28, 4294901760
  %75 = vmatprep.subr.mxu0 %v74
  %v76 = vand.u32 %v27, 4294901760
  %77 = vmatpush1.msra.mxu0 %v76
  %v78 = vand.u32 %v26, 4294901760
  %79 = vmatprep.subr.mxu0 %v78
  %v80 = vand.u32 %v25, 4294901760
  %81 = vmatpush1.msra.mxu0 %v80
  %v82 = vand.u32 %v24, 4294901760
  %83 = vmatprep.subr.mxu0 %v82
  %v84 = vand.u32 %v23, 4294901760
  %85 = vmatpush1.msra.mxu0 %v84
  %86 = vmatprep.subr.mxu0 0.0
  %87 = vmatpush2.msra.mxu0 0.0
  %88 = vmatprep.subr.mxu0 0.0
  %89 = vmatpush2.msra.mxu0 0.0
  %90 = vmatprep.subr.mxu0 0.0
  %91 = vmatpush2.msra.mxu0 0.0
  %92 = vmatprep.subr.mxu0 0.0
  %93 = vmatpush2.msra.mxu0 0.0
  %94 = vmatprep.subr.mxu0 0.0
  %95 = vmatpush2.msra.mxu0 0.0
  %96 = vmatprep.subr.mxu0 0.0
  %97 = vmatpush2.msra.mxu0 0.0
  %98 = vmatprep.subr.mxu0 0.0
  %99 = vmatpush2.msra.mxu0 0.0
  %100 = vmatprep.subr.mxu0 0.0
  %101 = vmatpush2.msra.mxu0 0.0
  %102 = vmatprep.subr.mxu0 0.0
  %103 = vmatpush2.msra.mxu0 0.0
  %104 = vmatprep.subr.mxu0 0.0
  %105 = vmatpush2.msra.mxu0 0.0
  %106 = vmatprep.subr.mxu0 0.0
  %107 = vmatpush2.msra.mxu0 0.0
  %108 = vmatprep.subr.mxu0 0.0
  %109 = vmatpush2.msra.mxu0 0.0
  %110 = vmatprep.subr.mxu0 0.0
  %111 = vmatpush2.msra.mxu0 0.0
  %112 = vmatprep.subr.mxu0 0.0
  %113 = vmatpush2.msra.mxu0 0.0
  %114 = vmatprep.subr.mxu0 0.0
  %115 = vmatpush2.msra.mxu0 0.0
  %116 = vmatprep.subr.mxu0 0.0
  %117 = vmatpush2.msra.mxu0 0.0
  %118 = vmatprep.mubr.f32.mxu0 0.0
  %v119 = vand.u32 %v35, 4294901760
  %v120 = vsub.f32 %v35, %v119
  %v121 = vand.u32 %v120, 4294901760
  %v122 = vsub.f32 %v120, %v121
  %v123 = vand.u32 %v122, 4294901760
  %124 = vmatmul.mubr.f32.gmra.mxu0 %v123
  %v125 = vpop.f32.mrf.mxu0
  %v126 = vadd.f32 0.0, %v125
  %v127 = vpop.f32.mrf.mxu0
  %v128 = vadd.f32 0.0, %v127
  %129 = vdwg.mxu0
  %130 = vmatprep.subr.mxu0 0.0
  %131 = vmatpush1.msra.mxu0 0.0
  %132 = vmatprep.subr.mxu0 0.0
  %133 = vmatpush1.msra.mxu0 0.0
  %134 = vmatprep.subr.mxu0 0.0
  %135 = vmatpush1.msra.mxu0 0.0
  %136 = vmatprep.subr.mxu0 0.0
  %137 = vmatpush1.msra.mxu0 0.0
  %138 = vmatprep.subr.mxu0 0.0
  %139 = vmatpush1.msra.mxu0 0.0
  %140 = vmatprep.subr.mxu0 0.0
  %141 = vmatpush1.msra.mxu0 0.0
  %142 = vmatprep.subr.mxu0 0.0
  %143 = vmatpush1.msra.mxu0 0.0
  %144 = vmatprep.subr.mxu0 0.0
  %145 = vmatpush1.msra.mxu0 0.0
  %146 = vmatprep.subr.mxu0 0.0
  %147 = vmatpush1.msra.mxu0 0.0
  %148 = vmatprep.subr.mxu0 0.0
  %149 = vmatpush1.msra.mxu0 0.0
  %150 = vmatprep.subr.mxu0 0.0
  %151 = vmatpush1.msra.mxu0 0.0
  %v152 = vand.u32 %v42, 4294901760
  %v153 = vsub.f32 %v42, %v152
  %v154 = vand.u32 %v153, 4294901760
  %v155 = vsub.f32 %v153, %v154
  %v156 = vand.u32 %v155, 4294901760
  %157 = vmatprep.subr.mxu0 %v156
  %v158 = vand.u32 %v39, 4294901760
  %v159 = vsub.f32 %v39, %v158
  %v160 = vand.u32 %v159, 4294901760
  %v161 = vsub.f32 %v159, %v160
  %v162 = vand.u32 %v161, 4294901760
  %163 = vmatpush1.msra.mxu0 %v162
  %v164 = vand.u32 %v30, 4294901760
  %v165 = vsub.f32 %v30, %v164
  %v166 = vand.u32 %v165, 4294901760
  %v167 = vsub.f32 %v165, %v166
  %v168 = vand.u32 %v167, 4294901760
  %169 = vmatprep.subr.mxu0 %v168
  %v170 = vand.u32 %v29, 4294901760
  %v171 = vsub.f32 %v29, %v170
  %v172 = vand.u32 %v171, 4294901760
  %v173 = vsub.f32 %v171, %v172
  %v174 = vand.u32 %v173, 4294901760
  %175 = vmatpush1.msra.mxu0 %v174
  %v176 = vand.u32 %v28, 4294901760
  %v177 = vsub.f32 %v28, %v176
  %v178 = vand.u32 %v177, 4294901760
  %v179 = vsub.f32 %v177, %v178
  %v180 = vand.u32 %v179, 4294901760
  %181 = vmatprep.subr.mxu0 %v180
  %v182 = vand.u32 %v27, 4294901760
  %v183 = vsub.f32 %v27, %v182
  %v184 = vand.u32 %v183, 4294901760
  %v185 = vsub.f32 %v183, %v184
  %v186 = vand.u32 %v185, 4294901760
  %187 = vmatpush1.msra.mxu0 %v186
  %v188 = vand.u32 %v26, 4294901760
  %v189 = vsub.f32 %v26, %v188
  %v190 = vand.u32 %v189, 4294901760
  %v191 = vsub.f32 %v189, %v190
  %v192 = vand.u32 %v191, 4294901760
  %193 = vmatprep.subr.mxu0 %v192
  %v194 = vand.u32 %v25, 4294901760
  %v195 = vsub.f32 %v25, %v194
  %v196 = vand.u32 %v195, 4294901760
  %v197 = vsub.f32 %v195, %v196
  %v198 = vand.u32 %v197, 4294901760
  %199 = vmatpush1.msra.mxu0 %v198
  %v200 = vand.u32 %v24, 4294901760
  %v201 = vsub.f32 %v24, %v200
  %v202 = vand.u32 %v201, 4294901760
  %v203 = vsub.f32 %v201, %v202
  %v204 = vand.u32 %v203, 4294901760
  %205 = vmatprep.subr.mxu0 %v204
  %v206 = vand.u32 %v23, 4294901760
  %v207 = vsub.f32 %v23, %v206
  %v208 = vand.u32 %v207, 4294901760
  %v209 = vsub.f32 %v207, %v208
  %v210 = vand.u32 %v209, 4294901760
  %211 = vmatpush1.msra.mxu0 %v210
  %212 = vmatprep.subr.mxu0 0.0
  %213 = vmatpush2.msra.mxu0 0.0
  %214 = vmatprep.subr.mxu0 0.0
  %215 = vmatpush2.msra.mxu0 0.0
  %216 = vmatprep.subr.mxu0 0.0
  %217 = vmatpush2.msra.mxu0 0.0
  %218 = vmatprep.subr.mxu0 0.0
  %219 = vmatpush2.msra.mxu0 0.0
  %220 = vmatprep.subr.mxu0 0.0
  %221 = vmatpush2.msra.mxu0 0.0
  %222 = vmatprep.subr.mxu0 0.0
  %223 = vmatpush2.msra.mxu0 0.0
  %224 = vmatprep.subr.mxu0 0.0
  %225 = vmatpush2.msra.mxu0 0.0
  %226 = vmatprep.subr.mxu0 0.0
  %227 = vmatpush2.msra.mxu0 0.0
  %228 = vmatprep.subr.mxu0 0.0
  %229 = vmatpush2.msra.mxu0 0.0
  %230 = vmatprep.subr.mxu0 0.0
  %231 = vmatpush2.msra.mxu0 0.0
  %232 = vmatprep.subr.mxu0 0.0
  %233 = vmatpush2.msra.mxu0 0.0
  %234 = vmatprep.subr.mxu0 0.0
  %235 = vmatpush2.msra.mxu0 0.0
  %236 = vmatprep.subr.mxu0 0.0
  %237 = vmatpush2.msra.mxu0 0.0
  %238 = vmatprep.subr.mxu0 0.0
  %239 = vmatpush2.msra.mxu0 0.0
  %240 = vmatprep.subr.mxu0 0.0
  %241 = vmatpush2.msra.mxu0 0.0
  %242 = vmatprep.subr.mxu0 0.0
  %243 = vmatpush2.msra.mxu0 0.0
  %244 = vmatprep.mubr.f32.mxu0 0.0
  %v245 = vand.u32 %v35, 4294901760
  %246 = vmatmul.mubr.f32.gmra.mxu0 %v245
  %v247 = vpop.f32.mrf.mxu0
  %v248 = vadd.f32 %v126, %v247
  %v249 = vpop.f32.mrf.mxu0
  %v250 = vadd.f32 %v128, %v249
  %251 = vdwg.mxu0
  %252 = vmatprep.subr.mxu0 0.0
  %253 = vmatpush1.msra.mxu0 0.0
  %254 = vmatprep.subr.mxu0 0.0
  %255 = vmatpush1.msra.mxu0 0.0
  %256 = vmatprep.subr.mxu0 0.0
  %257 = vmatpush1.msra.mxu0 0.0
  %258 = vmatprep.subr.mxu0 0.0
  %259 = vmatpush1.msra.mxu0 0.0
  %260 = vmatprep.subr.mxu0 0.0
  %261 = vmatpush1.msra.mxu0 0.0
  %262 = vmatprep.subr.mxu0 0.0
  %263 = vmatpush1.msra.mxu0 0.0
  %264 = vmatprep.subr.mxu0 0.0
  %265 = vmatpush1.msra.mxu0 0.0
  %266 = vmatprep.subr.mxu0 0.0
  %267 = vmatpush1.msra.mxu0 0.0
  %268 = vmatprep.subr.mxu0 0.0
  %269 = vmatpush1.msra.mxu0 0.0
  %270 = vmatprep.subr.mxu0 0.0
  %271 = vmatpush1.msra.mxu0 0.0
  %272 = vmatprep.subr.mxu0 0.0
  %273 = vmatpush1.msra.mxu0 0.0
  %v274 = vand.u32 %v42, 4294901760
  %v275 = vsub.f32 %v42, %v274
  %276 = vmatprep.subr.mxu0 %v275
  %v277 = vand.u32 %v39, 4294901760
  %v278 = vsub.f32 %v39, %v277
  %279 = vmatpush1.msra.mxu0 %v278
  %v280 = vand.u32 %v30, 4294901760
  %v281 = vsub.f32 %v30, %v280
  %282 = vmatprep.subr.mxu0 %v281
  %v283 = vand.u32 %v29, 4294901760
  %v284 = vsub.f32 %v29, %v283
  %285 = vmatpush1.msra.mxu0 %v284
  %v286 = vand.u32 %v28, 4294901760
  %v287 = vsub.f32 %v28, %v286
  %288 = vmatprep.subr.mxu0 %v287
  %v289 = vand.u32 %v27, 4294901760
  %v290 = vsub.f32 %v27, %v289
  %291 = vmatpush1.msra.mxu0 %v290
  %v292 = vand.u32 %v26, 4294901760
  %v293 = vsub.f32 %v26, %v292
  %294 = vmatprep.subr.mxu0 %v293
  %v295 = vand.u32 %v25, 4294901760
  %v296 = vsub.f32 %v25, %v295
  %297 = vmatpush1.msra.mxu0 %v296
  %v298 = vand.u32 %v24, 4294901760
  %v299 = vsub.f32 %v24, %v298
  %300 = vmatprep.subr.mxu0 %v299
  %v301 = vand.u32 %v23, 4294901760
  %v302 = vsub.f32 %v23, %v301
  %303 = vmatpush1.msra.mxu0 %v302
  %304 = vmatprep.subr.mxu0 0.0
  %305 = vmatpush2.msra.mxu0 0.0
  %306 = vmatprep.subr.mxu0 0.0
  %307 = vmatpush2.msra.mxu0 0.0
  %308 = vmatprep.subr.mxu0 0.0
  %309 = vmatpush2.msra.mxu0 0.0
  %310 = vmatprep.subr.mxu0 0.0
  %311 = vmatpush2.msra.mxu0 0.0
  %312 = vmatprep.subr.mxu0 0.0
  %313 = vmatpush2.msra.mxu0 0.0
  %314 = vmatprep.subr.mxu0 0.0
  %315 = vmatpush2.msra.mxu0 0.0
  %316 = vmatprep.subr.mxu0 0.0
  %317 = vmatpush2.msra.mxu0 0.0
  %318 = vmatprep.subr.mxu0 0.0
  %319 = vmatpush2.msra.mxu0 0.0
  %320 = vmatprep.subr.mxu0 0.0
  %321 = vmatpush2.msra.mxu0 0.0
  %322 = vmatprep.subr.mxu0 0.0
  %323 = vmatpush2.msra.mxu0 0.0
  %324 = vmatprep.subr.mxu0 0.0
  %325 = vmatpush2.msra.mxu0 0.0
  %326 = vmatprep.subr.mxu0 0.0
  %327 = vmatpush2.msra.mxu0 0.0
  %328 = vmatprep.subr.mxu0 0.0
  %329 = vmatpush2.msra.mxu0 0.0
  %330 = vmatprep.subr.mxu0 0.0
  %331 = vmatpush2.msra.mxu0 0.0
  %332 = vmatprep.subr.mxu0 0.0
  %333 = vmatpush2.msra.mxu0 0.0
  %334 = vmatprep.subr.mxu0 0.0
  %335 = vmatpush2.msra.mxu0 0.0
  %336 = vmatprep.mubr.f32.mxu0 0.0
  %v337 = vand.u32 %v35, 4294901760
  %v338 = vsub.f32 %v35, %v337
  %339 = vmatmul.mubr.f32.gmra.mxu0 %v338
  %v340 = vpop.f32.mrf.mxu0
  %v341 = vadd.f32 %v248, %v340
  %v342 = vpop.f32.mrf.mxu0
  %v343 = vadd.f32 %v250, %v342
  %344 = vdwg.mxu0
  %345 = vmatprep.subr.mxu0 0.0
  %346 = vmatpush1.msra.mxu0 0.0
  %347 = vmatprep.subr.mxu0 0.0
  %348 = vmatpush1.msra.mxu0 0.0
  %349 = vmatprep.subr.mxu0 0.0
  %350 = vmatpush1.msra.mxu0 0.0
  %351 = vmatprep.subr.mxu0 0.0
  %352 = vmatpush1.msra.mxu0 0.0
  %353 = vmatprep.subr.mxu0 0.0
  %354 = vmatpush1.msra.mxu0 0.0
  %355 = vmatprep.subr.mxu0 0.0
  %356 = vmatpush1.msra.mxu0 0.0
  %357 = vmatprep.subr.mxu0 0.0
  %358 = vmatpush1.msra.mxu0 0.0
  %359 = vmatprep.subr.mxu0 0.0
  %360 = vmatpush1.msra.mxu0 0.0
  %361 = vmatprep.subr.mxu0 0.0
  %362 = vmatpush1.msra.mxu0 0.0
  %363 = vmatprep.subr.mxu0 0.0
  %364 = vmatpush1.msra.mxu0 0.0
  %365 = vmatprep.subr.mxu0 0.0
  %366 = vmatpush1.msra.mxu0 0.0
  %v367 = vand.u32 %v42, 4294901760
  %368 = vmatprep.subr.mxu0 %v367
  %v369 = vand.u32 %v39, 4294901760
  %370 = vmatpush1.msra.mxu0 %v369
  %v371 = vand.u32 %v30, 4294901760
  %372 = vmatprep.subr.mxu0 %v371
  %v373 = vand.u32 %v29, 4294901760
  %374 = vmatpush1.msra.mxu0 %v373
  %v375 = vand.u32 %v28, 4294901760
  %376 = vmatprep.subr.mxu0 %v375
  %v377 = vand.u32 %v27, 4294901760
  %378 = vmatpush1.msra.mxu0 %v377
  %v379 = vand.u32 %v26, 4294901760
  %380 = vmatprep.subr.mxu0 %v379
  %v381 = vand.u32 %v25, 4294901760
  %382 = vmatpush1.msra.mxu0 %v381
  %v383 = vand.u32 %v24, 4294901760
  %384 = vmatprep.subr.mxu0 %v383
  %v385 = vand.u32 %v23, 4294901760
  %386 = vmatpush1.msra.mxu0 %v385
  %387 = vmatprep.subr.mxu0 0.0
  %388 = vmatpush2.msra.mxu0 0.0
  %389 = vmatprep.subr.mxu0 0.0
  %390 = vmatpush2.msra.mxu0 0.0
  %391 = vmatprep.subr.mxu0 0.0
  %392 = vmatpush2.msra.mxu0 0.0
  %393 = vmatprep.subr.mxu0 0.0
  %394 = vmatpush2.msra.mxu0 0.0
  %395 = vmatprep.subr.mxu0 0.0
  %396 = vmatpush2.msra.mxu0 0.0
  %397 = vmatprep.subr.mxu0 0.0
  %398 = vmatpush2.msra.mxu0 0.0
  %399 = vmatprep.subr.mxu0 0.0
  %400 = vmatpush2.msra.mxu0 0.0
  %401 = vmatprep.subr.mxu0 0.0
  %402 = vmatpush2.msra.mxu0 0.0
  %403 = vmatprep.subr.mxu0 0.0
  %404 = vmatpush2.msra.mxu0 0.0
  %405 = vmatprep.subr.mxu0 0.0
  %406 = vmatpush2.msra.mxu0 0.0
  %407 = vmatprep.subr.mxu0 0.0
  %408 = vmatpush2.msra.mxu0 0.0
  %409 = vmatprep.subr.mxu0 0.0
  %410 = vmatpush2.msra.mxu0 0.0
  %411 = vmatprep.subr.mxu0 0.0
  %412 = vmatpush2.msra.mxu0 0.0
  %413 = vmatprep.subr.mxu0 0.0
  %414 = vmatpush2.msra.mxu0 0.0
  %415 = vmatprep.subr.mxu0 0.0
  %416 = vmatpush2.msra.mxu0 0.0
  %417 = vmatprep.subr.mxu0 0.0
  %418 = vmatpush2.msra.mxu0 0.0
  %419 = vmatprep.mubr.f32.mxu0 0.0
  %v420 = vand.u32 %v35, 4294901760
  %v421 = vsub.f32 %v35, %v420
  %v422 = vand.u32 %v421, 4294901760
  %423 = vmatmul.mubr.f32.gmra.mxu0 %v422
  %v424 = vpop.f32.mrf.mxu0
  %v425 = vadd.f32 %v341, %v424
  %v426 = vpop.f32.mrf.mxu0
  %v427 = vadd.f32 %v343, %v426
  %428 = vdwg.mxu0
  %429 = vmatprep.subr.mxu0 0.0
  %430 = vmatpush1.msra.mxu0 0.0
  %431 = vmatprep.subr.mxu0 0.0
  %432 = vmatpush1.msra.mxu0 0.0
  %433 = vmatprep.subr.mxu0 0.0
  %434 = vmatpush1.msra.mxu0 0.0
  %435 = vmatprep.subr.mxu0 0.0
  %436 = vmatpush1.msra.mxu0 0.0
  %437 = vmatprep.subr.mxu0 0.0
  %438 = vmatpush1.msra.mxu0 0.0
  %439 = vmatprep.subr.mxu0 0.0
  %440 = vmatpush1.msra.mxu0 0.0
  %441 = vmatprep.subr.mxu0 0.0
  %442 = vmatpush1.msra.mxu0 0.0
  %443 = vmatprep.subr.mxu0 0.0
  %444 = vmatpush1.msra.mxu0 0.0
  %445 = vmatprep.subr.mxu0 0.0
  %446 = vmatpush1.msra.mxu0 0.0
  %447 = vmatprep.subr.mxu0 0.0
  %448 = vmatpush1.msra.mxu0 0.0
  %449 = vmatprep.subr.mxu0 0.0
  %450 = vmatpush1.msra.mxu0 0.0
  %v451 = vand.u32 %v42, 4294901760
  %v452 = vsub.f32 %v42, %v451
  %v453 = vand.u32 %v452, 4294901760
  %454 = vmatprep.subr.mxu0 %v453
  %v455 = vand.u32 %v39, 4294901760
  %v456 = vsub.f32 %v39, %v455
  %v457 = vand.u32 %v456, 4294901760
  %458 = vmatpush1.msra.mxu0 %v457
  %v459 = vand.u32 %v30, 4294901760
  %v460 = vsub.f32 %v30, %v459
  %v461 = vand.u32 %v460, 4294901760
  %462 = vmatprep.subr.mxu0 %v461
  %v463 = vand.u32 %v29, 4294901760
  %v464 = vsub.f32 %v29, %v463
  %v465 = vand.u32 %v464, 4294901760
  %466 = vmatpush1.msra.mxu0 %v465
  %v467 = vand.u32 %v28, 4294901760
  %v468 = vsub.f32 %v28, %v467
  %v469 = vand.u32 %v468, 4294901760
  %470 = vmatprep.subr.mxu0 %v469
  %v471 = vand.u32 %v27, 4294901760
  %v472 = vsub.f32 %v27, %v471
  %v473 = vand.u32 %v472, 4294901760
  %474 = vmatpush1.msra.mxu0 %v473
  %v475 = vand.u32 %v26, 4294901760
  %v476 = vsub.f32 %v26, %v475
  %v477 = vand.u32 %v476, 4294901760
  %478 = vmatprep.subr.mxu0 %v477
  %v479 = vand.u32 %v25, 4294901760
  %v480 = vsub.f32 %v25, %v479
  %v481 = vand.u32 %v480, 4294901760
  %482 = vmatpush1.msra.mxu0 %v481
  %v483 = vand.u32 %v24, 4294901760
  %v484 = vsub.f32 %v24, %v483
  %v485 = vand.u32 %v484, 4294901760
  %486 = vmatprep.subr.mxu0 %v485
  %v487 = vand.u32 %v23, 4294901760
  %v488 = vsub.f32 %v23, %v487
  %v489 = vand.u32 %v488, 4294901760
  %490 = vmatpush1.msra.mxu0 %v489
  %491 = vmatprep.subr.mxu0 0.0
  %492 = vmatpush2.msra.mxu0 0.0
  %493 = vmatprep.subr.mxu0 0.0
  %494 = vmatpush2.msra.mxu0 0.0
  %495 = vmatprep.subr.mxu0 0.0
  %496 = vmatpush2.msra.mxu0 0.0
  %497 = vmatprep.subr.mxu0 0.0
  %498 = vmatpush2.msra.mxu0 0.0
  %499 = vmatprep.subr.mxu0 0.0
  %500 = vmatpush2.msra.mxu0 0.0
  %501 = vmatprep.subr.mxu0 0.0
  %502 = vmatpush2.msra.mxu0 0.0
  %503 = vmatprep.subr.mxu0 0.0
  %504 = vmatpush2.msra.mxu0 0.0
  %505 = vmatprep.subr.mxu0 0.0
  %506 = vmatpush2.msra.mxu0 0.0
  %507 = vmatprep.subr.mxu0 0.0
  %508 = vmatpush2.msra.mxu0 0.0
  %509 = vmatprep.subr.mxu0 0.0
  %510 = vmatpush2.msra.mxu0 0.0
  %511 = vmatprep.subr.mxu0 0.0
  %512 = vmatpush2.msra.mxu0 0.0
  %513 = vmatprep.subr.mxu0 0.0
  %514 = vmatpush2.msra.mxu0 0.0
  %515 = vmatprep.subr.mxu0 0.0
  %516 = vmatpush2.msra.mxu0 0.0
  %517 = vmatprep.subr.mxu0 0.0
  %518 = vmatpush2.msra.mxu0 0.0
  %519 = vmatprep.subr.mxu0 0.0
  %520 = vmatpush2.msra.mxu0 0.0
  %521 = vmatprep.subr.mxu0 0.0
  %522 = vmatpush2.msra.mxu0 0.0
  %523 = vmatprep.mubr.f32.mxu0 0.0
  %v524 = vand.u32 %v35, 4294901760
  %525 = vmatmul.mubr.f32.gmra.mxu0 %v524
  %v526 = vpop.f32.mrf.mxu0
  %v527 = vadd.f32 %v425, %v526
  %v528 = vpop.f32.mrf.mxu0
  %v529 = vadd.f32 %v427, %v528
  %530 = vdwg.mxu0
  %531 = vmatprep.subr.mxu0 0.0
  %532 = vmatpush1.msra.mxu0 0.0
  %533 = vmatprep.subr.mxu0 0.0
  %534 = vmatpush1.msra.mxu0 0.0
  %535 = vmatprep.subr.mxu0 0.0
  %536 = vmatpush1.msra.mxu0 0.0
  %537 = vmatprep.subr.mxu0 0.0
  %538 = vmatpush1.msra.mxu0 0.0
  %539 = vmatprep.subr.mxu0 0.0
  %540 = vmatpush1.msra.mxu0 0.0
  %541 = vmatprep.subr.mxu0 0.0
  %542 = vmatpush1.msra.mxu0 0.0
  %543 = vmatprep.subr.mxu0 0.0
  %544 = vmatpush1.msra.mxu0 0.0
  %545 = vmatprep.subr.mxu0 0.0
  %546 = vmatpush1.msra.mxu0 0.0
  %547 = vmatprep.subr.mxu0 0.0
  %548 = vmatpush1.msra.mxu0 0.0
  %549 = vmatprep.subr.mxu0 0.0
  %550 = vmatpush1.msra.mxu0 0.0
  %551 = vmatprep.subr.mxu0 0.0
  %552 = vmatpush1.msra.mxu0 0.0
  %v553 = vand.u32 %v42, 4294901760
  %554 = vmatprep.subr.mxu0 %v553
  %v555 = vand.u32 %v39, 4294901760
  %556 = vmatpush1.msra.mxu0 %v555
  %v557 = vand.u32 %v30, 4294901760
  %558 = vmatprep.subr.mxu0 %v557
  %v559 = vand.u32 %v29, 4294901760
  %560 = vmatpush1.msra.mxu0 %v559
  %v561 = vand.u32 %v28, 4294901760
  %562 = vmatprep.subr.mxu0 %v561
  %v563 = vand.u32 %v27, 4294901760
  %564 = vmatpush1.msra.mxu0 %v563
  %v565 = vand.u32 %v26, 4294901760
  %566 = vmatprep.subr.mxu0 %v565
  %v567 = vand.u32 %v25, 4294901760
  %568 = vmatpush1.msra.mxu0 %v567
  %v569 = vand.u32 %v24, 4294901760
  %570 = vmatprep.subr.mxu0 %v569
  %v571 = vand.u32 %v23, 4294901760
  %572 = vmatpush1.msra.mxu0 %v571
  %573 = vmatprep.subr.mxu0 0.0
  %574 = vmatpush2.msra.mxu0 0.0
  %575 = vmatprep.subr.mxu0 0.0
  %576 = vmatpush2.msra.mxu0 0.0
  %577 = vmatprep.subr.mxu0 0.0
  %578 = vmatpush2.msra.mxu0 0.0
  %579 = vmatprep.subr.mxu0 0.0
  %580 = vmatpush2.msra.mxu0 0.0
  %581 = vmatprep.subr.mxu0 0.0
  %582 = vmatpush2.msra.mxu0 0.0
  %583 = vmatprep.subr.mxu0 0.0
  %584 = vmatpush2.msra.mxu0 0.0
  %585 = vmatprep.subr.mxu0 0.0
  %586 = vmatpush2.msra.mxu0 0.0
  %587 = vmatprep.subr.mxu0 0.0
  %588 = vmatpush2.msra.mxu0 0.0
  %589 = vmatprep.subr.mxu0 0.0
  %590 = vmatpush2.msra.mxu0 0.0
  %591 = vmatprep.subr.mxu0 0.0
  %592 = vmatpush2.msra.mxu0 0.0
  %593 = vmatprep.subr.mxu0 0.0
  %594 = vmatpush2.msra.mxu0 0.0
  %595 = vmatprep.subr.mxu0 0.0
  %596 = vmatpush2.msra.mxu0 0.0
  %597 = vmatprep.subr.mxu0 0.0
  %598 = vmatpush2.msra.mxu0 0.0
  %599 = vmatprep.subr.mxu0 0.0
  %600 = vmatpush2.msra.mxu0 0.0
  %601 = vmatprep.subr.mxu0 0.0
  %602 = vmatpush2.msra.mxu0 0.0
  %603 = vmatprep.subr.mxu0 0.0
  %604 = vmatpush2.msra.mxu0 0.0
  %605 = vmatprep.mubr.f32.mxu0 0.0
  %v606 = vand.u32 %v35, 4294901760
  %607 = vmatmul.mubr.f32.gmra.mxu0 %v606
  %v608 = vpop.f32.mrf.mxu0
  %v609 = vadd.f32 %v527, %v608
  %v610 = vpop.f32.mrf.mxu0
  %v611 = vadd.f32 %v529, %v610
  %612 = vdwg.mxu0
  %613 = vst [vmem:[%s4] sm:$0x3f] %v609
  %614 = vst [vmem:[%s4 + $0x8] sm:$0x3f] %v611
  %v615 = vld [vmem:[%s3] sm:$0xff]
  %v616 = vld [vmem:[%s3 + $0x8] sm:$0xff]
  %vm617 = vcmask 64512
  %v619 = vsel %vm617, %v20, 0
  %v622 = vsel %vm617, %v21, 0
  %v625 = vsel %vm617, %v22, 0
  %627 = vmatprep.subr.mxu0 0.0
  %628 = vmatpush1.msra.mxu0 0.0
  %629 = vmatprep.subr.mxu0 0.0
  %630 = vmatpush1.msra.mxu0 0.0
  %631 = vmatprep.subr.mxu0 0.0
  %632 = vmatpush1.msra.mxu0 0.0
  %633 = vmatprep.subr.mxu0 0.0
  %634 = vmatpush1.msra.mxu0 0.0
  %635 = vmatprep.subr.mxu0 0.0
  %636 = vmatpush1.msra.mxu0 0.0
  %637 = vmatprep.subr.mxu0 0.0
  %638 = vmatpush1.msra.mxu0 0.0
  %639 = vmatprep.subr.mxu0 0.0
  %640 = vmatpush1.msra.mxu0 0.0
  %641 = vmatprep.subr.mxu0 0.0
  %642 = vmatpush1.msra.mxu0 0.0
  %643 = vmatprep.subr.mxu0 0.0
  %644 = vmatpush1.msra.mxu0 0.0
  %645 = vmatprep.subr.mxu0 0.0
  %646 = vmatpush1.msra.mxu0 0.0
  %647 = vmatprep.subr.mxu0 0.0
  %648 = vmatpush1.msra.mxu0 0.0
  %649 = vmatprep.subr.mxu0 0.0
  %650 = vmatpush1.msra.mxu0 0.0
  %651 = vmatprep.subr.mxu0 0.0
  %652 = vmatpush1.msra.mxu0 0.0
  %653 = vmatprep.subr.mxu0 0.0
  %654 = vmatpush1.msra.mxu0 0.0
  %655 = vmatprep.subr.mxu0 0.0
  %656 = vmatpush1.msra.mxu0 0.0
  %v657 = vand.u32 %v616, 4294901760
  %658 = vmatprep.subr.mxu0 %v657
  %v659 = vand.u32 %v615, 4294901760
  %660 = vmatpush1.msra.mxu0 %v659
  %661 = vmatprep.subr.mxu0 0.0
  %662 = vmatpush2.msra.mxu0 0.0
  %663 = vmatprep.subr.mxu0 0.0
  %664 = vmatpush2.msra.mxu0 0.0
  %665 = vmatprep.subr.mxu0 0.0
  %666 = vmatpush2.msra.mxu0 0.0
  %667 = vmatprep.subr.mxu0 0.0
  %668 = vmatpush2.msra.mxu0 0.0
  %669 = vmatprep.subr.mxu0 0.0
  %670 = vmatpush2.msra.mxu0 0.0
  %671 = vmatprep.subr.mxu0 0.0
  %672 = vmatpush2.msra.mxu0 0.0
  %673 = vmatprep.subr.mxu0 0.0
  %674 = vmatpush2.msra.mxu0 0.0
  %675 = vmatprep.subr.mxu0 0.0
  %676 = vmatpush2.msra.mxu0 0.0
  %677 = vmatprep.subr.mxu0 0.0
  %678 = vmatpush2.msra.mxu0 0.0
  %679 = vmatprep.subr.mxu0 0.0
  %680 = vmatpush2.msra.mxu0 0.0
  %681 = vmatprep.subr.mxu0 0.0
  %682 = vmatpush2.msra.mxu0 0.0
  %683 = vmatprep.subr.mxu0 0.0
  %684 = vmatpush2.msra.mxu0 0.0
  %685 = vmatprep.subr.mxu0 0.0
  %686 = vmatpush2.msra.mxu0 0.0
  %687 = vmatprep.subr.mxu0 0.0
  %688 = vmatpush2.msra.mxu0 0.0
  %689 = vmatprep.subr.mxu0 0.0
  %690 = vmatpush2.msra.mxu0 0.0
  %691 = vmatprep.subr.mxu0 0.0
  %692 = vmatpush2.msra.mxu0 0.0
  %693 = vmatprep.mubr.f32.mxu0 0.0
  %v694 = vand.u32 %v619, 4294901760
  %v695 = vsub.f32 %v619, %v694
  %v696 = vand.u32 %v695, 4294901760
  %v697 = vsub.f32 %v695, %v696
  %v698 = vand.u32 %v697, 4294901760
  %699 = vmatmul.mubr.f32.gmra.mxu0 %v698
  %v700 = vpop.f32.mrf.mxu0
  %v701 = vadd.f32 0.0, %v700
  %v702 = vpop.f32.mrf.mxu0
  %v703 = vadd.f32 0.0, %v702
  %704 = vmatprep.mubr.f32.mxu0 0.0
  %v705 = vand.u32 %v622, 4294901760
  %v706 = vsub.f32 %v622, %v705
  %v707 = vand.u32 %v706, 4294901760
  %v708 = vsub.f32 %v706, %v707
  %v709 = vand.u32 %v708, 4294901760
  %710 = vmatmul.mubr.f32.gmra.mxu0 %v709
  %v711 = vpop.f32.mrf.mxu0
  %v712 = vadd.f32 0.0, %v711
  %v713 = vpop.f32.mrf.mxu0
  %v714 = vadd.f32 0.0, %v713
  %715 = vmatprep.mubr.f32.mxu0 0.0
  %v716 = vand.u32 %v625, 4294901760
  %v717 = vsub.f32 %v625, %v716
  %v718 = vand.u32 %v717, 4294901760
  %v719 = vsub.f32 %v717, %v718
  %v720 = vand.u32 %v719, 4294901760
  %721 = vmatmul.mubr.f32.gmra.mxu0 %v720
  %v722 = vpop.f32.mrf.mxu0
  %v723 = vadd.f32 0.0, %v722
  %v724 = vpop.f32.mrf.mxu0
  %v725 = vadd.f32 0.0, %v724
  %726 = vdwg.mxu0
  %727 = vmatprep.subr.mxu0 0.0
  %728 = vmatpush1.msra.mxu0 0.0
  %729 = vmatprep.subr.mxu0 0.0
  %730 = vmatpush1.msra.mxu0 0.0
  %731 = vmatprep.subr.mxu0 0.0
  %732 = vmatpush1.msra.mxu0 0.0
  %733 = vmatprep.subr.mxu0 0.0
  %734 = vmatpush1.msra.mxu0 0.0
  %735 = vmatprep.subr.mxu0 0.0
  %736 = vmatpush1.msra.mxu0 0.0
  %737 = vmatprep.subr.mxu0 0.0
  %738 = vmatpush1.msra.mxu0 0.0
  %739 = vmatprep.subr.mxu0 0.0
  %740 = vmatpush1.msra.mxu0 0.0
  %741 = vmatprep.subr.mxu0 0.0
  %742 = vmatpush1.msra.mxu0 0.0
  %743 = vmatprep.subr.mxu0 0.0
  %744 = vmatpush1.msra.mxu0 0.0
  %745 = vmatprep.subr.mxu0 0.0
  %746 = vmatpush1.msra.mxu0 0.0
  %747 = vmatprep.subr.mxu0 0.0
  %748 = vmatpush1.msra.mxu0 0.0
  %749 = vmatprep.subr.mxu0 0.0
  %750 = vmatpush1.msra.mxu0 0.0
  %751 = vmatprep.subr.mxu0 0.0
  %752 = vmatpush1.msra.mxu0 0.0
  %753 = vmatprep.subr.mxu0 0.0
  %754 = vmatpush1.msra.mxu0 0.0
  %755 = vmatprep.subr.mxu0 0.0
  %756 = vmatpush1.msra.mxu0 0.0
  %v757 = vand.u32 %v616, 4294901760
  %v758 = vsub.f32 %v616, %v757
  %v759 = vand.u32 %v758, 4294901760
  %v760 = vsub.f32 %v758, %v759
  %v761 = vand.u32 %v760, 4294901760
  %762 = vmatprep.subr.mxu0 %v761
  %v763 = vand.u32 %v615, 4294901760
  %v764 = vsub.f32 %v615, %v763
  %v765 = vand.u32 %v764, 4294901760
  %v766 = vsub.f32 %v764, %v765
  %v767 = vand.u32 %v766, 4294901760
  %768 = vmatpush1.msra.mxu0 %v767
  %769 = vmatprep.subr.mxu0 0.0
  %770 = vmatpush2.msra.mxu0 0.0
  %771 = vmatprep.subr.mxu0 0.0
  %772 = vmatpush2.msra.mxu0 0.0
  %773 = vmatprep.subr.mxu0 0.0
  %774 = vmatpush2.msra.mxu0 0.0
  %775 = vmatprep.subr.mxu0 0.0
  %776 = vmatpush2.msra.mxu0 0.0
  %777 = vmatprep.subr.mxu0 0.0
  %778 = vmatpush2.msra.mxu0 0.0
  %779 = vmatprep.subr.mxu0 0.0
  %780 = vmatpush2.msra.mxu0 0.0
  %781 = vmatprep.subr.mxu0 0.0
  %782 = vmatpush2.msra.mxu0 0.0
  %783 = vmatprep.subr.mxu0 0.0
  %784 = vmatpush2.msra.mxu0 0.0
  %785 = vmatprep.subr.mxu0 0.0
  %786 = vmatpush2.msra.mxu0 0.0
  %787 = vmatprep.subr.mxu0 0.0
  %788 = vmatpush2.msra.mxu0 0.0
  %789 = vmatprep.subr.mxu0 0.0
  %790 = vmatpush2.msra.mxu0 0.0
  %791 = vmatprep.subr.mxu0 0.0
  %792 = vmatpush2.msra.mxu0 0.0
  %793 = vmatprep.subr.mxu0 0.0
  %794 = vmatpush2.msra.mxu0 0.0
  %795 = vmatprep.subr.mxu0 0.0
  %796 = vmatpush2.msra.mxu0 0.0
  %797 = vmatprep.subr.mxu0 0.0
  %798 = vmatpush2.msra.mxu0 0.0
  %799 = vmatprep.subr.mxu0 0.0
  %800 = vmatpush2.msra.mxu0 0.0
  %801 = vmatprep.mubr.f32.mxu0 0.0
  %v802 = vand.u32 %v619, 4294901760
  %803 = vmatmul.mubr.f32.gmra.mxu0 %v802
  %v804 = vpop.f32.mrf.mxu0
  %v805 = vadd.f32 %v701, %v804
  %v806 = vpop.f32.mrf.mxu0
  %v807 = vadd.f32 %v703, %v806
  %808 = vmatprep.mubr.f32.mxu0 0.0
  %v809 = vand.u32 %v622, 4294901760
  %810 = vmatmul.mubr.f32.gmra.mxu0 %v809
  %v811 = vpop.f32.mrf.mxu0
  %v812 = vadd.f32 %v712, %v811
  %v813 = vpop.f32.mrf.mxu0
  %v814 = vadd.f32 %v714, %v813
  %815 = vmatprep.mubr.f32.mxu0 0.0
  %v816 = vand.u32 %v625, 4294901760
  %817 = vmatmul.mubr.f32.gmra.mxu0 %v816
  %v818 = vpop.f32.mrf.mxu0
  %v819 = vadd.f32 %v723, %v818
  %v820 = vpop.f32.mrf.mxu0
  %v821 = vadd.f32 %v725, %v820
  %822 = vdwg.mxu0
  %823 = vmatprep.subr.mxu0 0.0
  %824 = vmatpush1.msra.mxu0 0.0
  %825 = vmatprep.subr.mxu0 0.0
  %826 = vmatpush1.msra.mxu0 0.0
  %827 = vmatprep.subr.mxu0 0.0
  %828 = vmatpush1.msra.mxu0 0.0
  %829 = vmatprep.subr.mxu0 0.0
  %830 = vmatpush1.msra.mxu0 0.0
  %831 = vmatprep.subr.mxu0 0.0
  %832 = vmatpush1.msra.mxu0 0.0
  %833 = vmatprep.subr.mxu0 0.0
  %834 = vmatpush1.msra.mxu0 0.0
  %835 = vmatprep.subr.mxu0 0.0
  %836 = vmatpush1.msra.mxu0 0.0
  %837 = vmatprep.subr.mxu0 0.0
  %838 = vmatpush1.msra.mxu0 0.0
  %839 = vmatprep.subr.mxu0 0.0
  %840 = vmatpush1.msra.mxu0 0.0
  %841 = vmatprep.subr.mxu0 0.0
  %842 = vmatpush1.msra.mxu0 0.0
  %843 = vmatprep.subr.mxu0 0.0
  %844 = vmatpush1.msra.mxu0 0.0
  %845 = vmatprep.subr.mxu0 0.0
  %846 = vmatpush1.msra.mxu0 0.0
  %847 = vmatprep.subr.mxu0 0.0
  %848 = vmatpush1.msra.mxu0 0.0
  %849 = vmatprep.subr.mxu0 0.0
  %850 = vmatpush1.msra.mxu0 0.0
  %851 = vmatprep.subr.mxu0 0.0
  %852 = vmatpush1.msra.mxu0 0.0
  %v853 = vand.u32 %v616, 4294901760
  %v854 = vsub.f32 %v616, %v853
  %855 = vmatprep.subr.mxu0 %v854
  %v856 = vand.u32 %v615, 4294901760
  %v857 = vsub.f32 %v615, %v856
  %858 = vmatpush1.msra.mxu0 %v857
  %859 = vmatprep.subr.mxu0 0.0
  %860 = vmatpush2.msra.mxu0 0.0
  %861 = vmatprep.subr.mxu0 0.0
  %862 = vmatpush2.msra.mxu0 0.0
  %863 = vmatprep.subr.mxu0 0.0
  %864 = vmatpush2.msra.mxu0 0.0
  %865 = vmatprep.subr.mxu0 0.0
  %866 = vmatpush2.msra.mxu0 0.0
  %867 = vmatprep.subr.mxu0 0.0
  %868 = vmatpush2.msra.mxu0 0.0
  %869 = vmatprep.subr.mxu0 0.0
  %870 = vmatpush2.msra.mxu0 0.0
  %871 = vmatprep.subr.mxu0 0.0
  %872 = vmatpush2.msra.mxu0 0.0
  %873 = vmatprep.subr.mxu0 0.0
  %874 = vmatpush2.msra.mxu0 0.0
  %875 = vmatprep.subr.mxu0 0.0
  %876 = vmatpush2.msra.mxu0 0.0
  %877 = vmatprep.subr.mxu0 0.0
  %878 = vmatpush2.msra.mxu0 0.0
  %879 = vmatprep.subr.mxu0 0.0
  %880 = vmatpush2.msra.mxu0 0.0
  %881 = vmatprep.subr.mxu0 0.0
  %882 = vmatpush2.msra.mxu0 0.0
  %883 = vmatprep.subr.mxu0 0.0
  %884 = vmatpush2.msra.mxu0 0.0
  %885 = vmatprep.subr.mxu0 0.0
  %886 = vmatpush2.msra.mxu0 0.0
  %887 = vmatprep.subr.mxu0 0.0
  %888 = vmatpush2.msra.mxu0 0.0
  %889 = vmatprep.subr.mxu0 0.0
  %890 = vmatpush2.msra.mxu0 0.0
  %891 = vmatprep.mubr.f32.mxu0 0.0
  %v892 = vand.u32 %v619, 4294901760
  %v893 = vsub.f32 %v619, %v892
  %894 = vmatmul.mubr.f32.gmra.mxu0 %v893
  %v895 = vpop.f32.mrf.mxu0
  %v896 = vadd.f32 %v805, %v895
  %v897 = vpop.f32.mrf.mxu0
  %v898 = vadd.f32 %v807, %v897
  %899 = vmatprep.mubr.f32.mxu0 0.0
  %v900 = vand.u32 %v622, 4294901760
  %v901 = vsub.f32 %v622, %v900
  %902 = vmatmul.mubr.f32.gmra.mxu0 %v901
  %v903 = vpop.f32.mrf.mxu0
  %v904 = vadd.f32 %v812, %v903
  %v905 = vpop.f32.mrf.mxu0
  %v906 = vadd.f32 %v814, %v905
  %907 = vmatprep.mubr.f32.mxu0 0.0
  %v908 = vand.u32 %v625, 4294901760
  %v909 = vsub.f32 %v625, %v908
  %910 = vmatmul.mubr.f32.gmra.mxu0 %v909
  %v911 = vpop.f32.mrf.mxu0
  %v912 = vadd.f32 %v819, %v911
  %v913 = vpop.f32.mrf.mxu0
  %v914 = vadd.f32 %v821, %v913
  %915 = vdwg.mxu0
  %916 = vmatprep.subr.mxu0 0.0
  %917 = vmatpush1.msra.mxu0 0.0
  %918 = vmatprep.subr.mxu0 0.0
  %919 = vmatpush1.msra.mxu0 0.0
  %920 = vmatprep.subr.mxu0 0.0
  %921 = vmatpush1.msra.mxu0 0.0
  %922 = vmatprep.subr.mxu0 0.0
  %923 = vmatpush1.msra.mxu0 0.0
  %924 = vmatprep.subr.mxu0 0.0
  %925 = vmatpush1.msra.mxu0 0.0
  %926 = vmatprep.subr.mxu0 0.0
  %927 = vmatpush1.msra.mxu0 0.0
  %928 = vmatprep.subr.mxu0 0.0
  %929 = vmatpush1.msra.mxu0 0.0
  %930 = vmatprep.subr.mxu0 0.0
  %931 = vmatpush1.msra.mxu0 0.0
  %932 = vmatprep.subr.mxu0 0.0
  %933 = vmatpush1.msra.mxu0 0.0
  %934 = vmatprep.subr.mxu0 0.0
  %935 = vmatpush1.msra.mxu0 0.0
  %936 = vmatprep.subr.mxu0 0.0
  %937 = vmatpush1.msra.mxu0 0.0
  %938 = vmatprep.subr.mxu0 0.0
  %939 = vmatpush1.msra.mxu0 0.0
  %940 = vmatprep.subr.mxu0 0.0
  %941 = vmatpush1.msra.mxu0 0.0
  %942 = vmatprep.subr.mxu0 0.0
  %943 = vmatpush1.msra.mxu0 0.0
  %944 = vmatprep.subr.mxu0 0.0
  %945 = vmatpush1.msra.mxu0 0.0
  %v946 = vand.u32 %v616, 4294901760
  %947 = vmatprep.subr.mxu0 %v946
  %v948 = vand.u32 %v615, 4294901760
  %949 = vmatpush1.msra.mxu0 %v948
  %950 = vmatprep.subr.mxu0 0.0
  %951 = vmatpush2.msra.mxu0 0.0
  %952 = vmatprep.subr.mxu0 0.0
  %953 = vmatpush2.msra.mxu0 0.0
  %954 = vmatprep.subr.mxu0 0.0
  %955 = vmatpush2.msra.mxu0 0.0
  %956 = vmatprep.subr.mxu0 0.0
  %957 = vmatpush2.msra.mxu0 0.0
  %958 = vmatprep.subr.mxu0 0.0
  %959 = vmatpush2.msra.mxu0 0.0
  %960 = vmatprep.subr.mxu0 0.0
  %961 = vmatpush2.msra.mxu0 0.0
  %962 = vmatprep.subr.mxu0 0.0
  %963 = vmatpush2.msra.mxu0 0.0
  %964 = vmatprep.subr.mxu0 0.0
  %965 = vmatpush2.msra.mxu0 0.0
  %966 = vmatprep.subr.mxu0 0.0
  %967 = vmatpush2.msra.mxu0 0.0
  %968 = vmatprep.subr.mxu0 0.0
  %969 = vmatpush2.msra.mxu0 0.0
  %970 = vmatprep.subr.mxu0 0.0
  %971 = vmatpush2.msra.mxu0 0.0
  %972 = vmatprep.subr.mxu0 0.0
  %973 = vmatpush2.msra.mxu0 0.0
  %974 = vmatprep.subr.mxu0 0.0
  %975 = vmatpush2.msra.mxu0 0.0
  %976 = vmatprep.subr.mxu0 0.0
  %977 = vmatpush2.msra.mxu0 0.0
  %978 = vmatprep.subr.mxu0 0.0
  %979 = vmatpush2.msra.mxu0 0.0
  %980 = vmatprep.subr.mxu0 0.0
  %981 = vmatpush2.msra.mxu0 0.0
  %982 = vmatprep.mubr.f32.mxu0 0.0
  %v983 = vand.u32 %v619, 4294901760
  %v984 = vsub.f32 %v619, %v983
  %v985 = vand.u32 %v984, 4294901760
  %986 = vmatmul.mubr.f32.gmra.mxu0 %v985
  %v987 = vpop.f32.mrf.mxu0
  %v988 = vadd.f32 %v896, %v987
  %v989 = vpop.f32.mrf.mxu0
  %v990 = vadd.f32 %v898, %v989
  %991 = vmatprep.mubr.f32.mxu0 0.0
  %v992 = vand.u32 %v622, 4294901760
  %v993 = vsub.f32 %v622, %v992
  %v994 = vand.u32 %v993, 4294901760
  %995 = vmatmul.mubr.f32.gmra.mxu0 %v994
  %v996 = vpop.f32.mrf.mxu0
  %v997 = vadd.f32 %v904, %v996
  %v998 = vpop.f32.mrf.mxu0
  %v999 = vadd.f32 %v906, %v998
  %1000 = vmatprep.mubr.f32.mxu0 0.0
  %v1001 = vand.u32 %v625, 4294901760
  %v1002 = vsub.f32 %v625, %v1001
  %v1003 = vand.u32 %v1002, 4294901760
  %1004 = vmatmul.mubr.f32.gmra.mxu0 %v1003
  %v1005 = vpop.f32.mrf.mxu0
  %v1006 = vadd.f32 %v912, %v1005
  %v1007 = vpop.f32.mrf.mxu0
  %v1008 = vadd.f32 %v914, %v1007
  %1009 = vdwg.mxu0
  %1010 = vmatprep.subr.mxu0 0.0
  %1011 = vmatpush1.msra.mxu0 0.0
  %1012 = vmatprep.subr.mxu0 0.0
  %1013 = vmatpush1.msra.mxu0 0.0
  %1014 = vmatprep.subr.mxu0 0.0
  %1015 = vmatpush1.msra.mxu0 0.0
  %1016 = vmatprep.subr.mxu0 0.0
  %1017 = vmatpush1.msra.mxu0 0.0
  %1018 = vmatprep.subr.mxu0 0.0
  %1019 = vmatpush1.msra.mxu0 0.0
  %1020 = vmatprep.subr.mxu0 0.0
  %1021 = vmatpush1.msra.mxu0 0.0
  %1022 = vmatprep.subr.mxu0 0.0
  %1023 = vmatpush1.msra.mxu0 0.0
  %1024 = vmatprep.subr.mxu0 0.0
  %1025 = vmatpush1.msra.mxu0 0.0
  %1026 = vmatprep.subr.mxu0 0.0
  %1027 = vmatpush1.msra.mxu0 0.0
  %1028 = vmatprep.subr.mxu0 0.0
  %1029 = vmatpush1.msra.mxu0 0.0
  %1030 = vmatprep.subr.mxu0 0.0
  %1031 = vmatpush1.msra.mxu0 0.0
  %1032 = vmatprep.subr.mxu0 0.0
  %1033 = vmatpush1.msra.mxu0 0.0
  %1034 = vmatprep.subr.mxu0 0.0
  %1035 = vmatpush1.msra.mxu0 0.0
  %1036 = vmatprep.subr.mxu0 0.0
  %1037 = vmatpush1.msra.mxu0 0.0
  %1038 = vmatprep.subr.mxu0 0.0
  %1039 = vmatpush1.msra.mxu0 0.0
  %v1040 = vand.u32 %v616, 4294901760
  %v1041 = vsub.f32 %v616, %v1040
  %v1042 = vand.u32 %v1041, 4294901760
  %1043 = vmatprep.subr.mxu0 %v1042
  %v1044 = vand.u32 %v615, 4294901760
  %v1045 = vsub.f32 %v615, %v1044
  %v1046 = vand.u32 %v1045, 4294901760
  %1047 = vmatpush1.msra.mxu0 %v1046
  %1048 = vmatprep.subr.mxu0 0.0
  %1049 = vmatpush2.msra.mxu0 0.0
  %1050 = vmatprep.subr.mxu0 0.0
  %1051 = vmatpush2.msra.mxu0 0.0
  %1052 = vmatprep.subr.mxu0 0.0
  %1053 = vmatpush2.msra.mxu0 0.0
  %1054 = vmatprep.subr.mxu0 0.0
  %1055 = vmatpush2.msra.mxu0 0.0
  %1056 = vmatprep.subr.mxu0 0.0
  %1057 = vmatpush2.msra.mxu0 0.0
  %1058 = vmatprep.subr.mxu0 0.0
  %1059 = vmatpush2.msra.mxu0 0.0
  %1060 = vmatprep.subr.mxu0 0.0
  %1061 = vmatpush2.msra.mxu0 0.0
  %1062 = vmatprep.subr.mxu0 0.0
  %1063 = vmatpush2.msra.mxu0 0.0
  %1064 = vmatprep.subr.mxu0 0.0
  %1065 = vmatpush2.msra.mxu0 0.0
  %1066 = vmatprep.subr.mxu0 0.0
  %1067 = vmatpush2.msra.mxu0 0.0
  %1068 = vmatprep.subr.mxu0 0.0
  %1069 = vmatpush2.msra.mxu0 0.0
  %1070 = vmatprep.subr.mxu0 0.0
  %1071 = vmatpush2.msra.mxu0 0.0
  %1072 = vmatprep.subr.mxu0 0.0
  %1073 = vmatpush2.msra.mxu0 0.0
  %1074 = vmatprep.subr.mxu0 0.0
  %1075 = vmatpush2.msra.mxu0 0.0
  %1076 = vmatprep.subr.mxu0 0.0
  %1077 = vmatpush2.msra.mxu0 0.0
  %1078 = vmatprep.subr.mxu0 0.0
  %1079 = vmatpush2.msra.mxu0 0.0
  %1080 = vmatprep.mubr.f32.mxu0 0.0
  %v1081 = vand.u32 %v619, 4294901760
  %1082 = vmatmul.mubr.f32.gmra.mxu0 %v1081
  %v1083 = vpop.f32.mrf.mxu0
  %v1084 = vadd.f32 %v988, %v1083
  %v1085 = vpop.f32.mrf.mxu0
  %v1086 = vadd.f32 %v990, %v1085
  %1087 = vmatprep.mubr.f32.mxu0 0.0
  %v1088 = vand.u32 %v622, 4294901760
  %1089 = vmatmul.mubr.f32.gmra.mxu0 %v1088
  %v1090 = vpop.f32.mrf.mxu0
  %v1091 = vadd.f32 %v997, %v1090
  %v1092 = vpop.f32.mrf.mxu0
  %v1093 = vadd.f32 %v999, %v1092
  %1094 = vmatprep.mubr.f32.mxu0 0.0
  %v1095 = vand.u32 %v625, 4294901760
  %1096 = vmatmul.mubr.f32.gmra.mxu0 %v1095
  %v1097 = vpop.f32.mrf.mxu0
  %v1098 = vadd.f32 %v1006, %v1097
  %v1099 = vpop.f32.mrf.mxu0
  %v1100 = vadd.f32 %v1008, %v1099
  %1101 = vdwg.mxu0
  %1102 = vmatprep.subr.mxu0 0.0
  %1103 = vmatpush1.msra.mxu0 0.0
  %1104 = vmatprep.subr.mxu0 0.0
  %1105 = vmatpush1.msra.mxu0 0.0
  %1106 = vmatprep.subr.mxu0 0.0
  %1107 = vmatpush1.msra.mxu0 0.0
  %1108 = vmatprep.subr.mxu0 0.0
  %1109 = vmatpush1.msra.mxu0 0.0
  %1110 = vmatprep.subr.mxu0 0.0
  %1111 = vmatpush1.msra.mxu0 0.0
  %1112 = vmatprep.subr.mxu0 0.0
  %1113 = vmatpush1.msra.mxu0 0.0
  %1114 = vmatprep.subr.mxu0 0.0
  %1115 = vmatpush1.msra.mxu0 0.0
  %1116 = vmatprep.subr.mxu0 0.0
  %1117 = vmatpush1.msra.mxu0 0.0
  %1118 = vmatprep.subr.mxu0 0.0
  %1119 = vmatpush1.msra.mxu0 0.0
  %1120 = vmatprep.subr.mxu0 0.0
  %1121 = vmatpush1.msra.mxu0 0.0
  %1122 = vmatprep.subr.mxu0 0.0
  %1123 = vmatpush1.msra.mxu0 0.0
  %1124 = vmatprep.subr.mxu0 0.0
  %1125 = vmatpush1.msra.mxu0 0.0
  %1126 = vmatprep.subr.mxu0 0.0
  %1127 = vmatpush1.msra.mxu0 0.0
  %1128 = vmatprep.subr.mxu0 0.0
  %1129 = vmatpush1.msra.mxu0 0.0
  %1130 = vmatprep.subr.mxu0 0.0
  %1131 = vmatpush1.msra.mxu0 0.0
  %v1132 = vand.u32 %v616, 4294901760
  %1133 = vmatprep.subr.mxu0 %v1132
  %v1134 = vand.u32 %v615, 4294901760
  %1135 = vmatpush1.msra.mxu0 %v1134
  %1136 = vmatprep.subr.mxu0 0.0
  %1137 = vmatpush2.msra.mxu0 0.0
  %1138 = vmatprep.subr.mxu0 0.0
  %1139 = vmatpush2.msra.mxu0 0.0
  %1140 = vmatprep.subr.mxu0 0.0
  %1141 = vmatpush2.msra.mxu0 0.0
  %1142 = vmatprep.subr.mxu0 0.0
  %1143 = vmatpush2.msra.mxu0 0.0
  %1144 = vmatprep.subr.mxu0 0.0
  %1145 = vmatpush2.msra.mxu0 0.0
  %1146 = vmatprep.subr.mxu0 0.0
  %1147 = vmatpush2.msra.mxu0 0.0
  %1148 = vmatprep.subr.mxu0 0.0
  %1149 = vmatpush2.msra.mxu0 0.0
  %1150 = vmatprep.subr.mxu0 0.0
  %1151 = vmatpush2.msra.mxu0 0.0
  %1152 = vmatprep.subr.mxu0 0.0
  %1153 = vmatpush2.msra.mxu0 0.0
  %1154 = vmatprep.subr.mxu0 0.0
  %1155 = vmatpush2.msra.mxu0 0.0
  %1156 = vmatprep.subr.mxu0 0.0
  %1157 = vmatpush2.msra.mxu0 0.0
  %1158 = vmatprep.subr.mxu0 0.0
  %1159 = vmatpush2.msra.mxu0 0.0
  %1160 = vmatprep.subr.mxu0 0.0
  %1161 = vmatpush2.msra.mxu0 0.0
  %1162 = vmatprep.subr.mxu0 0.0
  %1163 = vmatpush2.msra.mxu0 0.0
  %1164 = vmatprep.subr.mxu0 0.0
  %1165 = vmatpush2.msra.mxu0 0.0
  %1166 = vmatprep.subr.mxu0 0.0
  %1167 = vmatpush2.msra.mxu0 0.0
  %1168 = vmatprep.mubr.f32.mxu0 0.0
  %v1169 = vand.u32 %v619, 4294901760
  %1170 = vmatmul.mubr.f32.gmra.mxu0 %v1169
  %v1171 = vpop.f32.mrf.mxu0
  %v1172 = vadd.f32 %v1084, %v1171
  %v1173 = vpop.f32.mrf.mxu0
  %v1174 = vadd.f32 %v1086, %v1173
  %1175 = vmatprep.mubr.f32.mxu0 0.0
  %v1176 = vand.u32 %v622, 4294901760
  %1177 = vmatmul.mubr.f32.gmra.mxu0 %v1176
  %v1178 = vpop.f32.mrf.mxu0
  %v1179 = vadd.f32 %v1091, %v1178
  %v1180 = vpop.f32.mrf.mxu0
  %v1181 = vadd.f32 %v1093, %v1180
  %1182 = vmatprep.mubr.f32.mxu0 0.0
  %v1183 = vand.u32 %v625, 4294901760
  %1184 = vmatmul.mubr.f32.gmra.mxu0 %v1183
  %v1185 = vpop.f32.mrf.mxu0
  %v1186 = vadd.f32 %v1098, %v1185
  %v1187 = vpop.f32.mrf.mxu0
  %v1188 = vadd.f32 %v1100, %v1187
  %1189 = vdwg.mxu0
  %v1190 = vmul.f32 %v1172, %v609
  %v1191 = vmul.f32 %v1174, %v611
  %v1194 = vrot.slane %v609, 4
  %v1195 = vrot.slane %v611, 4
  %v1198 = vmul.f32 %v1172, %v1194
  %v1199 = vmul.f32 %v1174, %v1195
  %v1202 = vrot.slane %v1198, 6
  %v1203 = vrot.slane %v1199, 6
  %v1206 = vadd.f32 %v1190, %v1202
  %v1207 = vadd.f32 %v1191, %v1203
  %v1208 = vmul.f32 %v1179, %v609
  %v1209 = vmul.f32 %v1181, %v611
  %v1212 = vrot.slane %v1208, 4
  %v1213 = vrot.slane %v1209, 4
  %v1216 = vadd.f32 %v1206, %v1212
  %v1217 = vadd.f32 %v1207, %v1213
  %v1220 = vrot.slane %v1186, 2
  %v1221 = vrot.slane %v1188, 2
  %v1224 = vadd.f32 %v1216, %v1220
  %v1225 = vadd.f32 %v1217, %v1221
  %1226 = vst [vmem:[%s5] sm:$0x3] %v1224
  %1227 = vst [vmem:[%s5 + $0x8] sm:$0x3] %v1225
  %v1228 = vrot.slane %v609, 6
  %v1229 = vrot.slane %v611, 6
  %v1232 = vmul.f32 %v1172, %v1228
  %v1233 = vmul.f32 %v1174, %v1229
  %v1234 = vrot.slane %v609, 2
  %v1235 = vrot.slane %v611, 2
  %v1238 = vmul.f32 %v1179, %v1234
  %v1239 = vmul.f32 %v1181, %v1235
  %v1242 = vrot.slane %v1238, 6
  %v1243 = vrot.slane %v1239, 6
  %v1246 = vadd.f32 %v1232, %v1242
  %v1247 = vadd.f32 %v1233, %v1243
  %v1248 = vmul.f32 %v1179, %v1228
  %v1249 = vmul.f32 %v1181, %v1229
  %v1252 = vrot.slane %v1248, 4
  %v1253 = vrot.slane %v1249, 4
  %v1256 = vadd.f32 %v1246, %v1252
  %v1257 = vadd.f32 %v1247, %v1253
  %v1258 = vadd.f32 %v1256, %v1220
  %v1259 = vadd.f32 %v1257, %v1221
  %1260 = vst [vmem:[%s5] sm:$0xc] %v1258
  %1261 = vst [vmem:[%s5 + $0x8] sm:$0xc] %v1259
  %v1262 = vrot.slane %v1208, 6
  %v1263 = vrot.slane %v1209, 6
  %v1266 = vadd.f32 %v1198, %v1262
  %v1267 = vadd.f32 %v1199, %v1263
  %v1268 = vmul.f32 %v1186, %v1194
  %v1269 = vmul.f32 %v1188, %v1195
  %v1272 = vrot.slane %v1268, 4
  %v1273 = vrot.slane %v1269, 4
  %v1276 = vadd.f32 %v1266, %v1272
  %v1277 = vadd.f32 %v1267, %v1273
  %v1278 = vadd.f32 %v1276, %v1220
  %v1279 = vadd.f32 %v1277, %v1221
  %1280 = vst [vmem:[%s5] sm:$0x30] %v1278
  %1281 = vst [vmem:[%s5 + $0x8] sm:$0x30] %v1279
  // Predicated region
  $region18: #{_smpl_forward.1} parent=0 // pred_check
    _
  $region19: #{_smpl_forward.1} parent=0 // pred_check_branch
    %1283 = sbr.rel (0) target = $region21
  $region20: #{_smpl_forward.1} parent=0 // pred_region
    _
  $region21: #{_smpl_forward.1} parent=0 // pred_fallthru
    _
  // Predicated region
  $region22: #{_smpl_forward.1} parent=0 // pred_check
    _
  $region23: #{_smpl_forward.1} parent=0 // pred_check_branch
    %1285 = sbr.rel (0) target = $region25
  $region24: #{_smpl_forward.1} parent=0 // pred_region
    _
  $region25: #{_smpl_forward.1} parent=0 // pred_fallthru
    _
  // Predicated region
  $region26: #{_smpl_forward.1} parent=0 // pred_check
    _
  $region27: #{_smpl_forward.1} parent=0 // pred_check_branch
    %1287 = sbr.rel (0) target = $region29
  $region28: #{_smpl_forward.1} parent=0 // pred_region
    _
  $region29: #{_smpl_forward.1} parent=0 // pred_fallthru
    _
  // Predicated region
  $region30: #{_smpl_forward.1} parent=0 // pred_check
    _
  $region31: #{_smpl_forward.1} parent=0 // pred_check_branch
    %1289 = sbr.rel (0) target = $region33
  $region32: #{_smpl_forward.1} parent=0 // pred_region
    _
  $region33: #{_smpl_forward.1} parent=0 // pred_fallthru
    _

</llo_original>
